<compile_context>
chip_gen: v6e
topology: v6e:2x2x1
jax: 0.10.0
libtpu: 0.0.40
codegen_flags: <defaults>
</compile_context>

<pallas_src>
import functools

import jax
import jax.numpy as jnp
import numpy as np
from jax import lax
from jax.experimental import pallas as pl
from jax.experimental.pallas import tpu as pltpu


def _attention_kernel(q_ref, k_ref, v_ref, bias_ref,
                      wq_ref, bq_ref, wk_ref, bk_ref, wv_ref, bv_ref,
                      o_ref, *, head, compute_dtype):
    """One grid step == one batch element, all heads fused.

    Blocks:
      q_ref    (1, Lq, Cq)    k_ref / v_ref (1, Lk, Ck)
      bias_ref (1, 1, Lk)     additive mask: 0.0 keep / -1e30 masked
      wq_ref   (Cq, NU)       wk_ref / wv_ref (Ck, NU)   (W pre-transposed,
                               1/scale already folded into wq/bq on host)
      b*_ref   (1, NU)
      o_ref    (1, Lq, NU)    lane-dense output
    """
    q = q_ref[0]                         # [Lq, Cq]
    k = k_ref[0]                         # [Lk, Ck]
    v = v_ref[0]                         # [Lk, Ck]
    bias = bias_ref[0]                   # [1, Lk]

    # Fused all-head projections: MXU N-dim = num_unit (not ds).
    qh = jnp.dot(q, wq_ref[...], preferred_element_type=jnp.float32) + bq_ref[...]
    kh = jnp.dot(k, wk_ref[...], preferred_element_type=jnp.float32) + bk_ref[...]
    vh = jnp.dot(v, wv_ref[...], preferred_element_type=jnp.float32) + bv_ref[...]

    nu = qh.shape[-1]
    ds = nu // head

    qh = qh.astype(compute_dtype)
    kh = kh.astype(compute_dtype)
    vh = vh.astype(compute_dtype)

    outs = []
    for h in range(head):                # static unroll; head is tiny
        sl = slice(h * ds, (h + 1) * ds)
        qh_h = qh[:, sl]                 # [Lq, ds]
        kh_h = kh[:, sl]                 # [Lk, ds]
        vh_h = vh[:, sl]                 # [Lk, ds]

        # q @ k^T with the contraction on the trailing dim of both operands:
        # no explicit transpose / XLU pass on kh.
        s = lax.dot_general(qh_h, kh_h, (((1,), (1,)), ((), ())),
                            preferred_element_type=jnp.float32)   # [Lq, Lk]
        s = s + bias                     # additive mask (scale already folded)

        # numerically-stable softmax over keys; reciprocal on the EUP slot
        smax = jnp.max(s, axis=-1, keepdims=True)
        p = jnp.exp(s - smax)
        denom = jnp.sum(p, axis=-1, keepdims=True)
        p = p * pl.reciprocal(denom, approx=True)

        outs.append(jnp.dot(p.astype(compute_dtype), vh_h,
                            preferred_element_type=jnp.float32))  # [Lq, ds]

    # Single lane-dense store of [Lq, num_unit] (== torch.cat over head splits).
    o_ref[0] = jnp.concatenate(outs, axis=-1).astype(o_ref.dtype)


def attention_layer_pallas(query, key, value, mask, params, *, num_unit, head,
                           scale_factor_d, compute_dtype=jnp.float32):
    """Pallas equivalent of AttentionLayer.forward (split=False path)."""
    B, Lq, Cq = query.shape
    _, Lk, Ck = key.shape

    Wq, bq, Wk, bk, Wv, bv = params      # torch Linear layout: W [out, in]

    # Fold 1/scale into the Q projection (free at trace time) and pre-transpose
    # the weights to [in, out] so the kernel does plain x @ W.
    inv_scale = jnp.float32(1.0 / float(scale_factor_d))
    wq_t = (Wq.T * inv_scale).astype(jnp.float32)          # [Cq, NU]
    bq_t = (bq * inv_scale).reshape(1, num_unit).astype(jnp.float32)
    wk_t = Wk.T.astype(jnp.float32)                        # [Ck, NU]
    bk_t = bk.reshape(1, num_unit).astype(jnp.float32)
    wv_t = Wv.T.astype(jnp.float32)                        # [Ck, NU]
    bv_t = bv.reshape(1, num_unit).astype(jnp.float32)

    # Additive mask bias over key positions (0 keep / -1e30 masked): avoids a
    # compare+select per score and the (-inf)-(-inf) NaN hazard.
    mask_bias = jnp.where(mask, 0.0, -1e30).astype(jnp.float32).reshape(B, 1, Lk)

    kernel = functools.partial(_attention_kernel, head=head,
                               compute_dtype=compute_dtype)

    return pl.pallas_call(
        kernel,
        out_shape=jax.ShapeDtypeStruct((B, Lq, num_unit), jnp.float32),
        grid=(B,),
        in_specs=[
            pl.BlockSpec((1, Lq, Cq), lambda b: (b, 0, 0)),        # query
            pl.BlockSpec((1, Lk, Ck), lambda b: (b, 0, 0)),        # key
            pl.BlockSpec((1, Lk, Ck), lambda b: (b, 0, 0)),        # value
            pl.BlockSpec((1, 1, Lk), lambda b: (b, 0, 0)),         # mask bias
            pl.BlockSpec((Cq, num_unit), lambda b: (0, 0)),        # Wq (scaled)
            pl.BlockSpec((1, num_unit), lambda b: (0, 0)),         # bq (scaled)
            pl.BlockSpec((Ck, num_unit), lambda b: (0, 0)),        # Wk
            pl.BlockSpec((1, num_unit), lambda b: (0, 0)),         # bk
            pl.BlockSpec((Ck, num_unit), lambda b: (0, 0)),        # Wv
            pl.BlockSpec((1, num_unit), lambda b: (0, 0)),         # bv
        ],
        out_specs=pl.BlockSpec((1, Lq, num_unit), lambda b: (b, 0, 0)),
        compiler_params=pltpu.CompilerParams(
            dimension_semantics=("parallel",)),                    # megacore/v7x
    )(query, key, value, mask_bias, wq_t, bq_t, wk_t, bk_t, wv_t, bv_t)
    # TODO(synk): for large Lq/Lk this should Lk-tile the K/V blocks
    # flash-attention style (online softmax) to stay under v7x's 64 MiB VMEM.


def attention_layer_ref(query, key, value, mask, params, *, num_unit, head,
                        scale_factor_d):
    """Pure-JAX reference mirroring the PyTorch forward, for verification."""
    Wq, bq, Wk, bk, Wv, bv = params
    B, Lq, _ = query.shape
    _, Lk, _ = key.shape
    ds = num_unit // head

    querys = query @ Wq.T + bq
    keys = key @ Wk.T + bk
    values = value @ Wv.T + bv

    def split_heads(x):                  # [B, L, num_unit] -> [head, B, L, ds]
        L = x.shape[1]
        return jnp.transpose(x.reshape(B, L, head, ds), (2, 0, 1, 3))

    qh, kh, vh = split_heads(querys), split_heads(keys), split_heads(values)
    scores = jnp.einsum('hbqd,hbkd->hbqk', qh, kh) / float(scale_factor_d)
    m = mask[None, :, None, :]           # [1, B, 1, Lk]
    scores = jnp.where(m, scores, -jnp.inf)
    p = jax.nn.softmax(scores, axis=3)
    out = jnp.einsum('hbqk,hbkd->hbqd', p, vh)       # [head, B, Lq, ds]
    return jnp.transpose(out, (1, 2, 0, 3)).reshape(B, Lq, num_unit)


def init_params(key, q_channels, k_channels, num_unit):
    """Deterministic init: xavier_uniform weights, torch-default uniform bias."""
    ks = jax.random.split(key, 6)

    def xavier(k, out_c, in_c):
        bound = float(np.sqrt(6.0 / (in_c + out_c)))
        return jax.random.uniform(k, (out_c, in_c), jnp.float32, -bound, bound)

    def bias(k, out_c, in_c):
        bound = 1.0 / float(np.sqrt(in_c))
        return jax.random.uniform(k, (out_c,), jnp.float32, -bound, bound)

    Wq = xavier(ks[0], num_unit, q_channels); bq = bias(ks[1], num_unit, q_channels)
    Wk = xavier(ks[2], num_unit, k_channels); bk = bias(ks[3], num_unit, k_channels)
    Wv = xavier(ks[4], num_unit, k_channels); bv = bias(ks[5], num_unit, k_channels)
    return (Wq, bq, Wk, bk, Wv, bv)


if __name__ == "__main__":
    # small shapes consistent with the module
    B, Lq, Lk = 2, 8, 8
    q_channels, k_channels = 16, 16
    num_unit, head = 32, 4
    scale_factor_d = 1 + int(np.sqrt(k_channels))     # == 5

    root = jax.random.PRNGKey(0)
    kp, kq, kk, kv = jax.random.split(root, 4)

    params = init_params(kp, q_channels, k_channels, num_unit)
    query = jax.random.normal(kq, (B, Lq, q_channels), jnp.float32)
    key = jax.random.normal(kk, (B, Lk, k_channels), jnp.float32)
    value = jax.random.normal(kv, (B, Lk, k_channels), jnp.float32)

    # boolean mask over key positions; every row keeps at least one position
    lengths = jnp.array([Lk, Lk - 3])
    mask = jnp.arange(Lk)[None, :] < lengths[:, None]          # [B, Lk] bool

    ref = attention_layer_ref(query, key, value, mask, params,
                              num_unit=num_unit, head=head,
                              scale_factor_d=scale_factor_d)

    # f32 compute path (default)
    out_f32 = attention_layer_pallas(query, key, value, mask, params,
                                     num_unit=num_unit, head=head,
                                     scale_factor_d=scale_factor_d,
                                     compute_dtype=jnp.float32)
    out_f32 = jax.block_until_ready(out_f32)
    np.testing.assert_allclose(np.asarray(out_f32), np.asarray(ref),
                               rtol=1e-2, atol=1e-2)

    # bf16 MXU-input path (v6e / v7x throughput mode), f32 accumulation
    out_bf16 = attention_layer_pallas(query, key, value, mask, params,
                                      num_unit=num_unit, head=head,
                                      scale_factor_d=scale_factor_d,
                                      compute_dtype=jnp.bfloat16)
    out_bf16 = jax.block_until_ready(out_bf16)
    np.testing.assert_allclose(np.asarray(out_bf16), np.asarray(ref),
                               rtol=5e-2, atol=5e-2)

    print("KERNEL_OK")
</pallas_src>

<mosaic_0001>
module attributes {stable_mosaic.version = 11 : i64} {
  func.func @_attention_kernel(%arg0: i32, %arg1: memref<1x8x16xf32, #tpu.memory_space<vmem>>, %arg2: memref<1x8x16xf32, #tpu.memory_space<vmem>>, %arg3: memref<1x8x16xf32, #tpu.memory_space<vmem>>, %arg4: memref<1x1x8xf32, #tpu.memory_space<vmem>>, %arg5: memref<16x32xf32, #tpu.memory_space<vmem>>, %arg6: memref<1x32xf32, #tpu.memory_space<vmem>>, %arg7: memref<16x32xf32, #tpu.memory_space<vmem>>, %arg8: memref<1x32xf32, #tpu.memory_space<vmem>>, %arg9: memref<16x32xf32, #tpu.memory_space<vmem>>, %arg10: memref<1x32xf32, #tpu.memory_space<vmem>>, %arg11: memref<1x8x32xf32, #tpu.memory_space<vmem>>) attributes {dimension_semantics = [#tpu.dimension_semantics<parallel>], iteration_bounds = array<i64: 2>, scalar_prefetch = 0 : i64, scratch_operands = 0 : i64, tpu.core_type = #tpu.core_type<tc>, window_params = [{transform_indices = @transform_0, window_bounds = array<i64: 1, 8, 16>}, {transform_indices = @transform_1, window_bounds = array<i64: 1, 8, 16>}, {transform_indices = @transform_2, window_bounds = array<i64: 1, 8, 16>}, {transform_indices = @transform_3, window_bounds = array<i64: 1, 1, 8>}, {pipeline_mode = #tpu.pipeline_mode<synchronous>, transform_indices = @transform_4, window_bounds = array<i64: 16, 32>}, {pipeline_mode = #tpu.pipeline_mode<synchronous>, transform_indices = @transform_5, window_bounds = array<i64: 1, 32>}, {pipeline_mode = #tpu.pipeline_mode<synchronous>, transform_indices = @transform_6, window_bounds = array<i64: 16, 32>}, {pipeline_mode = #tpu.pipeline_mode<synchronous>, transform_indices = @transform_7, window_bounds = array<i64: 1, 32>}, {pipeline_mode = #tpu.pipeline_mode<synchronous>, transform_indices = @transform_8, window_bounds = array<i64: 16, 32>}, {pipeline_mode = #tpu.pipeline_mode<synchronous>, transform_indices = @transform_9, window_bounds = array<i64: 1, 32>}, {transform_indices = @transform_10, window_bounds = array<i64: 1, 8, 32>}]} {
    %c0 = arith.constant 0 : index
    %c0_0 = arith.constant 0 : index
    %c0_1 = arith.constant 0 : index
    %0 = vector.load %arg1[%c0, %c0_0, %c0_1] : memref<1x8x16xf32, #tpu.memory_space<vmem>>, vector<1x8x16xf32>
    %1 = vector.shape_cast %0 : vector<1x8x16xf32> to vector<8x16xf32>
    %c0_2 = arith.constant 0 : index
    %c0_3 = arith.constant 0 : index
    %c0_4 = arith.constant 0 : index
    %2 = vector.load %arg2[%c0_2, %c0_3, %c0_4] : memref<1x8x16xf32, #tpu.memory_space<vmem>>, vector<1x8x16xf32>
    %3 = vector.shape_cast %2 : vector<1x8x16xf32> to vector<8x16xf32>
    %c0_5 = arith.constant 0 : index
    %c0_6 = arith.constant 0 : index
    %c0_7 = arith.constant 0 : index
    %4 = vector.load %arg3[%c0_5, %c0_6, %c0_7] : memref<1x8x16xf32, #tpu.memory_space<vmem>>, vector<1x8x16xf32>
    %5 = vector.shape_cast %4 : vector<1x8x16xf32> to vector<8x16xf32>
    %c0_8 = arith.constant 0 : index
    %c0_9 = arith.constant 0 : index
    %c0_10 = arith.constant 0 : index
    %6 = vector.load %arg4[%c0_8, %c0_9, %c0_10] : memref<1x1x8xf32, #tpu.memory_space<vmem>>, vector<1x1x8xf32>
    %7 = vector.shape_cast %6 : vector<1x1x8xf32> to vector<1x8xf32>
    %c0_11 = arith.constant 0 : index
    %c0_12 = arith.constant 0 : index
    %8 = vector.load %arg5[%c0_11, %c0_12] : memref<16x32xf32, #tpu.memory_space<vmem>>, vector<16x32xf32>
    %cst = arith.constant dense<0.000000e+00> : vector<8x32xf32>
    %9 = tpu.matmul %1, %8, %cst {dimension_numbers = #tpu.dot_dimension_numbers<[1], [0], [0], [1], [0, 0, 1, 1], [], []>} : vector<8x16xf32>, vector<16x32xf32>, vector<8x32xf32> -> vector<8x32xf32>
    %c0_13 = arith.constant 0 : index
    %c0_14 = arith.constant 0 : index
    %10 = vector.load %arg6[%c0_13, %c0_14] : memref<1x32xf32, #tpu.memory_space<vmem>>, vector<1x32xf32>
    %11 = vector.broadcast %10 : vector<1x32xf32> to vector<8x32xf32>
    %12 = arith.addf %9, %11 : vector<8x32xf32>
    %c0_15 = arith.constant 0 : index
    %c0_16 = arith.constant 0 : index
    %13 = vector.load %arg7[%c0_15, %c0_16] : memref<16x32xf32, #tpu.memory_space<vmem>>, vector<16x32xf32>
    %cst_17 = arith.constant dense<0.000000e+00> : vector<8x32xf32>
    %14 = tpu.matmul %3, %13, %cst_17 {dimension_numbers = #tpu.dot_dimension_numbers<[1], [0], [0], [1], [0, 0, 1, 1], [], []>} : vector<8x16xf32>, vector<16x32xf32>, vector<8x32xf32> -> vector<8x32xf32>
    %c0_18 = arith.constant 0 : index
    %c0_19 = arith.constant 0 : index
    %15 = vector.load %arg8[%c0_18, %c0_19] : memref<1x32xf32, #tpu.memory_space<vmem>>, vector<1x32xf32>
    %16 = vector.broadcast %15 : vector<1x32xf32> to vector<8x32xf32>
    %17 = arith.addf %14, %16 : vector<8x32xf32>
    %c0_20 = arith.constant 0 : index
    %c0_21 = arith.constant 0 : index
    %18 = vector.load %arg9[%c0_20, %c0_21] : memref<16x32xf32, #tpu.memory_space<vmem>>, vector<16x32xf32>
    %cst_22 = arith.constant dense<0.000000e+00> : vector<8x32xf32>
    %19 = tpu.matmul %5, %18, %cst_22 {dimension_numbers = #tpu.dot_dimension_numbers<[1], [0], [0], [1], [0, 0, 1, 1], [], []>} : vector<8x16xf32>, vector<16x32xf32>, vector<8x32xf32> -> vector<8x32xf32>
    %c0_23 = arith.constant 0 : index
    %c0_24 = arith.constant 0 : index
    %20 = vector.load %arg10[%c0_23, %c0_24] : memref<1x32xf32, #tpu.memory_space<vmem>>, vector<1x32xf32>
    %21 = vector.broadcast %20 : vector<1x32xf32> to vector<8x32xf32>
    %22 = arith.addf %19, %21 : vector<8x32xf32>
    %23 = vector.extract_strided_slice %12 {offsets = [0, 0], sizes = [8, 8], strides = [1, 1]} : vector<8x32xf32> to vector<8x8xf32>
    %24 = vector.extract_strided_slice %17 {offsets = [0, 0], sizes = [8, 8], strides = [1, 1]} : vector<8x32xf32> to vector<8x8xf32>
    %25 = vector.extract_strided_slice %22 {offsets = [0, 0], sizes = [8, 8], strides = [1, 1]} : vector<8x32xf32> to vector<8x8xf32>
    %cst_25 = arith.constant dense<0.000000e+00> : vector<8x8xf32>
    %26 = tpu.matmul %23, %24, %cst_25 {dimension_numbers = #tpu.dot_dimension_numbers<[1], [1], [0], [0], [0, 0, 1, 0], [], []>} : vector<8x8xf32>, vector<8x8xf32>, vector<8x8xf32> -> vector<8x8xf32>
    %27 = vector.broadcast %7 : vector<1x8xf32> to vector<8x8xf32>
    %28 = arith.addf %26, %27 : vector<8x8xf32>
    %cst_26 = arith.constant dense<0xFF800000> : vector<8xf32>
    %29 = vector.multi_reduction <maximumf>, %28, %cst_26 [1] : vector<8x8xf32> to vector<8xf32>
    %30 = vector.shape_cast %29 : vector<8xf32> to vector<8x1xf32>
    %31 = vector.broadcast %30 : vector<8x1xf32> to vector<8x8xf32>
    %32 = arith.subf %28, %31 : vector<8x8xf32>
    %33 = math.exp %32 : vector<8x8xf32>
    %cst_27 = arith.constant dense<0.000000e+00> : vector<8xf32>
    %34 = vector.multi_reduction <add>, %33, %cst_27 [1] : vector<8x8xf32> to vector<8xf32>
    %35 = vector.shape_cast %34 : vector<8xf32> to vector<8x1xf32>
    %36 = tpu.reciprocal %35 {approx = true} : vector<8x1xf32> -> vector<8x1xf32>
    %37 = vector.broadcast %36 : vector<8x1xf32> to vector<8x8xf32>
    %38 = arith.mulf %33, %37 : vector<8x8xf32>
    %cst_28 = arith.constant dense<0.000000e+00> : vector<8x8xf32>
    %39 = tpu.matmul %38, %25, %cst_28 {dimension_numbers = #tpu.dot_dimension_numbers<[1], [0], [0], [1], [0, 0, 1, 1], [], []>} : vector<8x8xf32>, vector<8x8xf32>, vector<8x8xf32> -> vector<8x8xf32>
    %40 = vector.extract_strided_slice %12 {offsets = [0, 8], sizes = [8, 8], strides = [1, 1]} : vector<8x32xf32> to vector<8x8xf32>
    %41 = vector.extract_strided_slice %17 {offsets = [0, 8], sizes = [8, 8], strides = [1, 1]} : vector<8x32xf32> to vector<8x8xf32>
    %42 = vector.extract_strided_slice %22 {offsets = [0, 8], sizes = [8, 8], strides = [1, 1]} : vector<8x32xf32> to vector<8x8xf32>
    %cst_29 = arith.constant dense<0.000000e+00> : vector<8x8xf32>
    %43 = tpu.matmul %40, %41, %cst_29 {dimension_numbers = #tpu.dot_dimension_numbers<[1], [1], [0], [0], [0, 0, 1, 0], [], []>} : vector<8x8xf32>, vector<8x8xf32>, vector<8x8xf32> -> vector<8x8xf32>
    %44 = vector.broadcast %7 : vector<1x8xf32> to vector<8x8xf32>
    %45 = arith.addf %43, %44 : vector<8x8xf32>
    %cst_30 = arith.constant dense<0xFF800000> : vector<8xf32>
    %46 = vector.multi_reduction <maximumf>, %45, %cst_30 [1] : vector<8x8xf32> to vector<8xf32>
    %47 = vector.shape_cast %46 : vector<8xf32> to vector<8x1xf32>
    %48 = vector.broadcast %47 : vector<8x1xf32> to vector<8x8xf32>
    %49 = arith.subf %45, %48 : vector<8x8xf32>
    %50 = math.exp %49 : vector<8x8xf32>
    %cst_31 = arith.constant dense<0.000000e+00> : vector<8xf32>
    %51 = vector.multi_reduction <add>, %50, %cst_31 [1] : vector<8x8xf32> to vector<8xf32>
    %52 = vector.shape_cast %51 : vector<8xf32> to vector<8x1xf32>
    %53 = tpu.reciprocal %52 {approx = true} : vector<8x1xf32> -> vector<8x1xf32>
    %54 = vector.broadcast %53 : vector<8x1xf32> to vector<8x8xf32>
    %55 = arith.mulf %50, %54 : vector<8x8xf32>
    %cst_32 = arith.constant dense<0.000000e+00> : vector<8x8xf32>
    %56 = tpu.matmul %55, %42, %cst_32 {dimension_numbers = #tpu.dot_dimension_numbers<[1], [0], [0], [1], [0, 0, 1, 1], [], []>} : vector<8x8xf32>, vector<8x8xf32>, vector<8x8xf32> -> vector<8x8xf32>
    %57 = vector.extract_strided_slice %12 {offsets = [0, 16], sizes = [8, 8], strides = [1, 1]} : vector<8x32xf32> to vector<8x8xf32>
    %58 = vector.extract_strided_slice %17 {offsets = [0, 16], sizes = [8, 8], strides = [1, 1]} : vector<8x32xf32> to vector<8x8xf32>
    %59 = vector.extract_strided_slice %22 {offsets = [0, 16], sizes = [8, 8], strides = [1, 1]} : vector<8x32xf32> to vector<8x8xf32>
    %cst_33 = arith.constant dense<0.000000e+00> : vector<8x8xf32>
    %60 = tpu.matmul %57, %58, %cst_33 {dimension_numbers = #tpu.dot_dimension_numbers<[1], [1], [0], [0], [0, 0, 1, 0], [], []>} : vector<8x8xf32>, vector<8x8xf32>, vector<8x8xf32> -> vector<8x8xf32>
    %61 = vector.broadcast %7 : vector<1x8xf32> to vector<8x8xf32>
    %62 = arith.addf %60, %61 : vector<8x8xf32>
    %cst_34 = arith.constant dense<0xFF800000> : vector<8xf32>
    %63 = vector.multi_reduction <maximumf>, %62, %cst_34 [1] : vector<8x8xf32> to vector<8xf32>
    %64 = vector.shape_cast %63 : vector<8xf32> to vector<8x1xf32>
    %65 = vector.broadcast %64 : vector<8x1xf32> to vector<8x8xf32>
    %66 = arith.subf %62, %65 : vector<8x8xf32>
    %67 = math.exp %66 : vector<8x8xf32>
    %cst_35 = arith.constant dense<0.000000e+00> : vector<8xf32>
    %68 = vector.multi_reduction <add>, %67, %cst_35 [1] : vector<8x8xf32> to vector<8xf32>
    %69 = vector.shape_cast %68 : vector<8xf32> to vector<8x1xf32>
    %70 = tpu.reciprocal %69 {approx = true} : vector<8x1xf32> -> vector<8x1xf32>
    %71 = vector.broadcast %70 : vector<8x1xf32> to vector<8x8xf32>
    %72 = arith.mulf %67, %71 : vector<8x8xf32>
    %cst_36 = arith.constant dense<0.000000e+00> : vector<8x8xf32>
    %73 = tpu.matmul %72, %59, %cst_36 {dimension_numbers = #tpu.dot_dimension_numbers<[1], [0], [0], [1], [0, 0, 1, 1], [], []>} : vector<8x8xf32>, vector<8x8xf32>, vector<8x8xf32> -> vector<8x8xf32>
    %74 = vector.extract_strided_slice %12 {offsets = [0, 24], sizes = [8, 8], strides = [1, 1]} : vector<8x32xf32> to vector<8x8xf32>
    %75 = vector.extract_strided_slice %17 {offsets = [0, 24], sizes = [8, 8], strides = [1, 1]} : vector<8x32xf32> to vector<8x8xf32>
    %76 = vector.extract_strided_slice %22 {offsets = [0, 24], sizes = [8, 8], strides = [1, 1]} : vector<8x32xf32> to vector<8x8xf32>
    %cst_37 = arith.constant dense<0.000000e+00> : vector<8x8xf32>
    %77 = tpu.matmul %74, %75, %cst_37 {dimension_numbers = #tpu.dot_dimension_numbers<[1], [1], [0], [0], [0, 0, 1, 0], [], []>} : vector<8x8xf32>, vector<8x8xf32>, vector<8x8xf32> -> vector<8x8xf32>
    %78 = vector.broadcast %7 : vector<1x8xf32> to vector<8x8xf32>
    %79 = arith.addf %77, %78 : vector<8x8xf32>
    %cst_38 = arith.constant dense<0xFF800000> : vector<8xf32>
    %80 = vector.multi_reduction <maximumf>, %79, %cst_38 [1] : vector<8x8xf32> to vector<8xf32>
    %81 = vector.shape_cast %80 : vector<8xf32> to vector<8x1xf32>
    %82 = vector.broadcast %81 : vector<8x1xf32> to vector<8x8xf32>
    %83 = arith.subf %79, %82 : vector<8x8xf32>
    %84 = math.exp %83 : vector<8x8xf32>
    %cst_39 = arith.constant dense<0.000000e+00> : vector<8xf32>
    %85 = vector.multi_reduction <add>, %84, %cst_39 [1] : vector<8x8xf32> to vector<8xf32>
    %86 = vector.shape_cast %85 : vector<8xf32> to vector<8x1xf32>
    %87 = tpu.reciprocal %86 {approx = true} : vector<8x1xf32> -> vector<8x1xf32>
    %88 = vector.broadcast %87 : vector<8x1xf32> to vector<8x8xf32>
    %89 = arith.mulf %84, %88 : vector<8x8xf32>
    %cst_40 = arith.constant dense<0.000000e+00> : vector<8x8xf32>
    %90 = tpu.matmul %89, %76, %cst_40 {dimension_numbers = #tpu.dot_dimension_numbers<[1], [0], [0], [1], [0, 0, 1, 1], [], []>} : vector<8x8xf32>, vector<8x8xf32>, vector<8x8xf32> -> vector<8x8xf32>
    %91 = tpu.concatenate %39, %56, %73, %90 in 1 : vector<8x8xf32>, vector<8x8xf32>, vector<8x8xf32>, vector<8x8xf32> -> vector<8x32xf32>
    %c0_41 = arith.constant 0 : index
    %c0_42 = arith.constant 0 : index
    %c0_43 = arith.constant 0 : index
    %92 = vector.load %arg11[%c0_41, %c0_42, %c0_43] : memref<1x8x32xf32, #tpu.memory_space<vmem>>, vector<1x8x32xf32>
    %93 = vector.shape_cast %92 : vector<1x8x32xf32> to vector<8x32xf32>
    %94 = vector.shape_cast %91 : vector<8x32xf32> to vector<1x8x32xf32>
    tpu.vector_store %arg11[%c0_41, %c0_42, %c0_43], %94 {strides = array<i32>} : memref<1x8x32xf32, #tpu.memory_space<vmem>>, vector<1x8x32xf32>,
    return
  }
  func.func @transform_0(%arg0: i32) -> (i32, i32, i32) {
    %c0_i32 = arith.constant 0 : i32
    %c0_i32_0 = arith.constant 0 : i32
    %c0_i32_1 = arith.constant 0 : i32
    return %arg0, %c0_i32, %c0_i32_0 : i32, i32, i32
  }
  func.func @transform_1(%arg0: i32) -> (i32, i32, i32) {
    %c0_i32 = arith.constant 0 : i32
    %c0_i32_0 = arith.constant 0 : i32
    %c0_i32_1 = arith.constant 0 : i32
    return %arg0, %c0_i32, %c0_i32_0 : i32, i32, i32
  }
  func.func @transform_2(%arg0: i32) -> (i32, i32, i32) {
    %c0_i32 = arith.constant 0 : i32
    %c0_i32_0 = arith.constant 0 : i32
    %c0_i32_1 = arith.constant 0 : i32
    return %arg0, %c0_i32, %c0_i32_0 : i32, i32, i32
  }
  func.func @transform_3(%arg0: i32) -> (i32, i32, i32) {
    %c0_i32 = arith.constant 0 : i32
    %c0_i32_0 = arith.constant 0 : i32
    %c0_i32_1 = arith.constant 0 : i32
    return %arg0, %c0_i32, %c0_i32_0 : i32, i32, i32
  }
  func.func @transform_4(%arg0: i32) -> (i32, i32) {
    %c0_i32 = arith.constant 0 : i32
    %c0_i32_0 = arith.constant 0 : i32
    %c0_i32_1 = arith.constant 0 : i32
    return %c0_i32, %c0_i32_0 : i32, i32
  }
  func.func @transform_5(%arg0: i32) -> (i32, i32) {
    %c0_i32 = arith.constant 0 : i32
    %c0_i32_0 = arith.constant 0 : i32
    %c0_i32_1 = arith.constant 0 : i32
    return %c0_i32, %c0_i32_0 : i32, i32
  }
  func.func @transform_6(%arg0: i32) -> (i32, i32) {
    %c0_i32 = arith.constant 0 : i32
    %c0_i32_0 = arith.constant 0 : i32
    %c0_i32_1 = arith.constant 0 : i32
    return %c0_i32, %c0_i32_0 : i32, i32
  }
  func.func @transform_7(%arg0: i32) -> (i32, i32) {
    %c0_i32 = arith.constant 0 : i32
    %c0_i32_0 = arith.constant 0 : i32
    %c0_i32_1 = arith.constant 0 : i32
    return %c0_i32, %c0_i32_0 : i32, i32
  }
  func.func @transform_8(%arg0: i32) -> (i32, i32) {
    %c0_i32 = arith.constant 0 : i32
    %c0_i32_0 = arith.constant 0 : i32
    %c0_i32_1 = arith.constant 0 : i32
    return %c0_i32, %c0_i32_0 : i32, i32
  }
  func.func @transform_9(%arg0: i32) -> (i32, i32) {
    %c0_i32 = arith.constant 0 : i32
    %c0_i32_0 = arith.constant 0 : i32
    %c0_i32_1 = arith.constant 0 : i32
    return %c0_i32, %c0_i32_0 : i32, i32
  }
  func.func @transform_10(%arg0: i32) -> (i32, i32, i32) {
    %c0_i32 = arith.constant 0 : i32
    %c0_i32_0 = arith.constant 0 : i32
    %c0_i32_1 = arith.constant 0 : i32
    return %arg0, %c0_i32, %c0_i32_0 : i32, i32, i32
  }
}

</mosaic_0001>

<llo_original>
// kernel: tpu_custom_call.1
$region0: #{tpu_custom_call.1}
  #allocation0 [shape = 'u32[]', space=smem, size = 0x4, offset = 0x4, fixed_abs, tag = 'smem constant byte address 0x4 - core index']
  #allocation1 [shape = 'u32[144,128]{1,0:T(1,128)}', space=vmem, size = 0x12000, scoped, tag = 'internal scratch']
  %s0 = inlined_call_operand.hbm [shape: f32[2,8,16], index: 0, kind: input, shape index: {}]
  %s1 = inlined_call_operand.hbm [shape: f32[2,8,16], index: 1, kind: input, shape index: {}]
  %s2 = inlined_call_operand.hbm [shape: f32[2,8,16], index: 2, kind: input, shape index: {}]
  %s3 = inlined_call_operand.vmem [shape: f32[2,1,8], index: 3, kind: input, shape index: {}]
  %s4 = inlined_call_operand.hbm [shape: f32[16,32], index: 4, kind: input, shape index: {}]
  %s5 = inlined_call_operand.vmem [shape: f32[1,32], index: 5, kind: input, shape index: {}]
  %s6 = inlined_call_operand.hbm [shape: f32[16,32], index: 6, kind: input, shape index: {}]
  %s7 = inlined_call_operand.vmem [shape: f32[1,32], index: 7, kind: input, shape index: {}]
  %s8 = inlined_call_operand.hbm [shape: f32[16,32], index: 8, kind: input, shape index: {}]
  %s9 = inlined_call_operand.vmem [shape: f32[1,32], index: 9, kind: input, shape index: {}]
  %s10 = inlined_call_operand.hbm [shape: f32[2,8,32], index: 10, kind: output, shape index: {}]
  %s11 = sld [smem:[#allocation0]]
  $region97: #{tpu_custom_call.1} parent=0
    _
  %s13 = ssub.s32 1, %s11
  %s14 = scalar_select 0, %s13, %s11
  $region1: #{tpu_custom_call.1} parent=0
    #allocation2 [shape = 'u8[8192]{0}', space=vmem, size = 0x2000, scoped, tag = 'input window, operand 0']
    #allocation3 [shape = 's32[2]{0}', space=sflag, size = 0x8, scoped, tag = 'scoped memory for tpu_custom_call.1']
    #allocation4 [shape = 's32[2]{0}', space=sflag, size = 0x8, scoped, tag = 'scoped memory for tpu_custom_call.1']
    #allocation5 [shape = 'u8[8192]{0}', space=vmem, size = 0x2000, scoped, tag = 'input window, operand 1']
    #allocation6 [shape = 's32[2]{0}', space=sflag, size = 0x8, scoped, tag = 'scoped memory for tpu_custom_call.1']
    #allocation7 [shape = 'u8[8192]{0}', space=vmem, size = 0x2000, scoped, tag = 'input window, operand 2']
    #allocation8 [shape = 'u8[8192]{0}', space=vmem, size = 0x2000, scoped, tag = 'input window, operand 4, single buffered']
    #allocation9 [shape = 's32[1]{0}', space=sflag, size = 0x4, scoped, tag = 'scoped memory for tpu_custom_call.1']
    #allocation10 [shape = 'u8[8192]{0}', space=vmem, size = 0x2000, scoped, tag = 'input window, operand 6, single buffered']
    #allocation11 [shape = 'u8[8192]{0}', space=vmem, size = 0x2000, scoped, tag = 'input window, operand 8, single buffered']
    #allocation12 [shape = 's32[1]{0}', space=sflag, size = 0x4, scoped, tag = 'scoped memory for tpu_custom_call.1']
    #allocation13 [shape = 'u8[8192]{0}', space=vmem, size = 0x2000, scoped, tag = 'output window, operand 0']
    %15 = vsyncpa [#allocation3], 0
    %s16 = scalar_lea.sflag [#allocation3], 1
    %17 = vsyncpa %s16, 0
    %18 = vsyncpa [#allocation6], 0
    %s19 = scalar_lea.sflag [#allocation6], 1
    %20 = vsyncpa %s19, 0
    %21 = vsyncpa [#allocation9], 0
    %22 = vsyncpa [#allocation12], 0
    %23 = vsyncpa [#allocation4], 0
    %s24 = scalar_lea.sflag [#allocation4], 1
    %25 = vsyncpa %s24, 0
    loop: start=0, step=1, limit=4
    $region2: #{tpu_custom_call.1} parent=1 // loop_pre_header
      _
    $region3: #{tpu_custom_call.1} parent=1 // loop_header
      %s27 = sphi 0, %s31
      %p28 = scmp.ge.s32.totalorder %s27, 4
      %s37 = sphi 0, %s39
      %s40 = sphi 0, %s37
      %s41 = sphi 0, %s40
      %s57 = sphi 0, %s41
      %s63 = sphi 0, %s65
      %s66 = sphi 0, %s63
      %s67 = sphi 0, %s66
      %s83 = sphi 0, %s67
      %s89 = sphi 0, %s91
      %s92 = sphi 0, %s89
      %s93 = sphi 0, %s92
      %s109 = sphi 0, %s93
      %s115 = sphi 0, %s117
      %s118 = sphi 0, %s115
      %s119 = sphi 0, %s118
      %s135 = sphi 0, %s119
      %s139 = sphi 0, %s139
      %s141 = sphi 0, %s139
      %s142 = sphi 0, %s141
      %s156 = sphi 0, %s142
      %s160 = sphi 0, %s160
      %s162 = sphi 0, %s160
      %s163 = sphi 0, %s162
      %s177 = sphi 0, %s163
      %s181 = sphi 0, %s181
      %s183 = sphi 0, %s181
      %s184 = sphi 0, %s183
      %s198 = sphi 0, %s184
      %s202 = sphi 0, %s202
      %s204 = sphi 0, %s202
      %s205 = sphi 0, %s204
      %s219 = sphi 0, %s205
      %s223 = sphi 0, %s223
      %s225 = sphi 0, %s223
      %s226 = sphi 0, %s225
      %s240 = sphi 0, %s226
      %s244 = sphi 0, %s244
      %s246 = sphi 0, %s244
      %s247 = sphi 0, %s246
      %s261 = sphi 0, %s247
      %s267 = sphi 0, %s269
      %s270 = sphi 0, %s267
      %s271 = sphi 0, %s270
      %s287 = sphi 0, %s271
    $region4: #{tpu_custom_call.1} parent=1 // loop_header_branch
      %30 = sbr.rel (%p28) target = $region8
    $region5: #{tpu_custom_call.1} parent=1 // loop_body
      %s32 = ssub.s32 %s27, 1
      %s33 = ssub.s32 %s27, 2
      %s34 = sadd.s32 %s27, 1
      %s35 = ssub.s32 %s27, %s34
      %p36 = scmp.eq.s32.totalorder %s35, 0
      %s38 = sadd.s32 %s37, 1
      %s39 = scalar_select %p36, %s37, %s38
      %p42 = pneg %p36
      %p43 = scmp.eq.s32.totalorder %s27, 1
      %p44 = por %p42, %p43
      %p45 = scmp.ne.s32.totalorder %s37, %s40
      %p46 = scmp.eq.s32.totalorder %s27, 0
      %p47 = por %p45, %p46
      %p48 = scmp.ne.s32.totalorder %s37, %s40
      %p49 = scmp.eq.s32.totalorder %s32, 1
      %p50 = por %p48, %p49
      %p51 = scmp.ne.s32.totalorder %s40, %s41
      %p52 = scmp.eq.s32.totalorder %s32, 0
      %p53 = por %p51, %p52
      %p54 = scmp.ne.s32.totalorder %s40, %s41
      %p55 = scmp.eq.s32.totalorder %s33, 1
      %p56 = por %p54, %p55
      %p58 = scmp.ne.s32.totalorder %s41, %s57
      %p59 = scmp.eq.s32.totalorder %s33, 0
      %p60 = por %p58, %p59
      %s61 = ssub.s32 %s27, %s34
      %p62 = scmp.eq.s32.totalorder %s61, 0
      %s64 = sadd.s32 %s63, 1
      %s65 = scalar_select %p62, %s63, %s64
      %p68 = pneg %p62
      %p69 = scmp.eq.s32.totalorder %s27, 1
      %p70 = por %p68, %p69
      %p71 = scmp.ne.s32.totalorder %s63, %s66
      %p72 = scmp.eq.s32.totalorder %s27, 0
      %p73 = por %p71, %p72
      %p74 = scmp.ne.s32.totalorder %s63, %s66
      %p75 = scmp.eq.s32.totalorder %s32, 1
      %p76 = por %p74, %p75
      %p77 = scmp.ne.s32.totalorder %s66, %s67
      %p78 = scmp.eq.s32.totalorder %s32, 0
      %p79 = por %p77, %p78
      %p80 = scmp.ne.s32.totalorder %s66, %s67
      %p81 = scmp.eq.s32.totalorder %s33, 1
      %p82 = por %p80, %p81
      %p84 = scmp.ne.s32.totalorder %s67, %s83
      %p85 = scmp.eq.s32.totalorder %s33, 0
      %p86 = por %p84, %p85
      %s87 = ssub.s32 %s27, %s34
      %p88 = scmp.eq.s32.totalorder %s87, 0
      %s90 = sadd.s32 %s89, 1
      %s91 = scalar_select %p88, %s89, %s90
      %p94 = pneg %p88
      %p95 = scmp.eq.s32.totalorder %s27, 1
      %p96 = por %p94, %p95
      %p97 = scmp.ne.s32.totalorder %s89, %s92
      %p98 = scmp.eq.s32.totalorder %s27, 0
      %p99 = por %p97, %p98
      %p100 = scmp.ne.s32.totalorder %s89, %s92
      %p101 = scmp.eq.s32.totalorder %s32, 1
      %p102 = por %p100, %p101
      %p103 = scmp.ne.s32.totalorder %s92, %s93
      %p104 = scmp.eq.s32.totalorder %s32, 0
      %p105 = por %p103, %p104
      %p106 = scmp.ne.s32.totalorder %s92, %s93
      %p107 = scmp.eq.s32.totalorder %s33, 1
      %p108 = por %p106, %p107
      %p110 = scmp.ne.s32.totalorder %s93, %s109
      %p111 = scmp.eq.s32.totalorder %s33, 0
      %p112 = por %p110, %p111
      %s113 = ssub.s32 %s27, %s34
      %p114 = scmp.eq.s32.totalorder %s113, 0
      %s116 = sadd.s32 %s115, 1
      %s117 = scalar_select %p114, %s115, %s116
      %p120 = pneg %p114
      %p121 = scmp.eq.s32.totalorder %s27, 1
      %p122 = por %p120, %p121
      %p123 = scmp.ne.s32.totalorder %s115, %s118
      %p124 = scmp.eq.s32.totalorder %s27, 0
      %p125 = por %p123, %p124
      %p126 = scmp.ne.s32.totalorder %s115, %s118
      %p127 = scmp.eq.s32.totalorder %s32, 1
      %p128 = por %p126, %p127
      %p129 = scmp.ne.s32.totalorder %s118, %s119
      %p130 = scmp.eq.s32.totalorder %s32, 0
      %p131 = por %p129, %p130
      %p132 = scmp.ne.s32.totalorder %s118, %s119
      %p133 = scmp.eq.s32.totalorder %s33, 1
      %p134 = por %p132, %p133
      %p136 = scmp.ne.s32.totalorder %s119, %s135
      %p137 = scmp.eq.s32.totalorder %s33, 0
      %p138 = por %p136, %p137
      %s140 = sadd.s32 %s139, 1
      %p143 = scmp.eq.s32.totalorder %s27, 1
      %p144 = scmp.ne.s32.totalorder %s139, %s141
      %p145 = scmp.eq.s32.totalorder %s27, 0
      %p146 = por %p144, %p145
      %p147 = scmp.ne.s32.totalorder %s139, %s141
      %p148 = scmp.eq.s32.totalorder %s32, 1
      %p149 = por %p147, %p148
      %p150 = scmp.ne.s32.totalorder %s141, %s142
      %p151 = scmp.eq.s32.totalorder %s32, 0
      %p152 = por %p150, %p151
      %p153 = scmp.ne.s32.totalorder %s141, %s142
      %p154 = scmp.eq.s32.totalorder %s33, 1
      %p155 = por %p153, %p154
      %p157 = scmp.ne.s32.totalorder %s142, %s156
      %p158 = scmp.eq.s32.totalorder %s33, 0
      %p159 = por %p157, %p158
      %s161 = sadd.s32 %s160, 1
      %p164 = scmp.eq.s32.totalorder %s27, 1
      %p165 = scmp.ne.s32.totalorder %s160, %s162
      %p166 = scmp.eq.s32.totalorder %s27, 0
      %p167 = por %p165, %p166
      %p168 = scmp.ne.s32.totalorder %s160, %s162
      %p169 = scmp.eq.s32.totalorder %s32, 1
      %p170 = por %p168, %p169
      %p171 = scmp.ne.s32.totalorder %s162, %s163
      %p172 = scmp.eq.s32.totalorder %s32, 0
      %p173 = por %p171, %p172
      %p174 = scmp.ne.s32.totalorder %s162, %s163
      %p175 = scmp.eq.s32.totalorder %s33, 1
      %p176 = por %p174, %p175
      %p178 = scmp.ne.s32.totalorder %s163, %s177
      %p179 = scmp.eq.s32.totalorder %s33, 0
      %p180 = por %p178, %p179
      %s182 = sadd.s32 %s181, 1
      %p185 = scmp.eq.s32.totalorder %s27, 1
      %p186 = scmp.ne.s32.totalorder %s181, %s183
      %p187 = scmp.eq.s32.totalorder %s27, 0
      %p188 = por %p186, %p187
      %p189 = scmp.ne.s32.totalorder %s181, %s183
      %p190 = scmp.eq.s32.totalorder %s32, 1
      %p191 = por %p189, %p190
      %p192 = scmp.ne.s32.totalorder %s183, %s184
      %p193 = scmp.eq.s32.totalorder %s32, 0
      %p194 = por %p192, %p193
      %p195 = scmp.ne.s32.totalorder %s183, %s184
      %p196 = scmp.eq.s32.totalorder %s33, 1
      %p197 = por %p195, %p196
      %p199 = scmp.ne.s32.totalorder %s184, %s198
      %p200 = scmp.eq.s32.totalorder %s33, 0
      %p201 = por %p199, %p200
      %s203 = sadd.s32 %s202, 1
      %p206 = scmp.eq.s32.totalorder %s27, 1
      %p207 = scmp.ne.s32.totalorder %s202, %s204
      %p208 = scmp.eq.s32.totalorder %s27, 0
      %p209 = por %p207, %p208
      %p210 = scmp.ne.s32.totalorder %s202, %s204
      %p211 = scmp.eq.s32.totalorder %s32, 1
      %p212 = por %p210, %p211
      %p213 = scmp.ne.s32.totalorder %s204, %s205
      %p214 = scmp.eq.s32.totalorder %s32, 0
      %p215 = por %p213, %p214
      %p216 = scmp.ne.s32.totalorder %s204, %s205
      %p217 = scmp.eq.s32.totalorder %s33, 1
      %p218 = por %p216, %p217
      %p220 = scmp.ne.s32.totalorder %s205, %s219
      %p221 = scmp.eq.s32.totalorder %s33, 0
      %p222 = por %p220, %p221
      %s224 = sadd.s32 %s223, 1
      %p227 = scmp.eq.s32.totalorder %s27, 1
      %p228 = scmp.ne.s32.totalorder %s223, %s225
      %p229 = scmp.eq.s32.totalorder %s27, 0
      %p230 = por %p228, %p229
      %p231 = scmp.ne.s32.totalorder %s223, %s225
      %p232 = scmp.eq.s32.totalorder %s32, 1
      %p233 = por %p231, %p232
      %p234 = scmp.ne.s32.totalorder %s225, %s226
      %p235 = scmp.eq.s32.totalorder %s32, 0
      %p236 = por %p234, %p235
      %p237 = scmp.ne.s32.totalorder %s225, %s226
      %p238 = scmp.eq.s32.totalorder %s33, 1
      %p239 = por %p237, %p238
      %p241 = scmp.ne.s32.totalorder %s226, %s240
      %p242 = scmp.eq.s32.totalorder %s33, 0
      %p243 = por %p241, %p242
      %s245 = sadd.s32 %s244, 1
      %p248 = scmp.eq.s32.totalorder %s27, 1
      %p249 = scmp.ne.s32.totalorder %s244, %s246
      %p250 = scmp.eq.s32.totalorder %s27, 0
      %p251 = por %p249, %p250
      %p252 = scmp.ne.s32.totalorder %s244, %s246
      %p253 = scmp.eq.s32.totalorder %s32, 1
      %p254 = por %p252, %p253
      %p255 = scmp.ne.s32.totalorder %s246, %s247
      %p256 = scmp.eq.s32.totalorder %s32, 0
      %p257 = por %p255, %p256
      %p258 = scmp.ne.s32.totalorder %s246, %s247
      %p259 = scmp.eq.s32.totalorder %s33, 1
      %p260 = por %p258, %p259
      %p262 = scmp.ne.s32.totalorder %s247, %s261
      %p263 = scmp.eq.s32.totalorder %s33, 0
      %p264 = por %p262, %p263
      %s265 = ssub.s32 %s27, %s34
      %p266 = scmp.eq.s32.totalorder %s265, 0
      %s268 = sadd.s32 %s267, 1
      %s269 = scalar_select %p266, %s267, %s268
      %p272 = pneg %p266
      %p273 = scmp.eq.s32.totalorder %s27, 1
      %p274 = por %p272, %p273
      %p275 = scmp.ne.s32.totalorder %s267, %s270
      %p276 = scmp.eq.s32.totalorder %s27, 0
      %p277 = por %p275, %p276
      %p278 = scmp.ne.s32.totalorder %s267, %s270
      %p279 = scmp.eq.s32.totalorder %s32, 1
      %p280 = por %p278, %p279
      %p281 = scmp.ne.s32.totalorder %s270, %s271
      %p282 = scmp.eq.s32.totalorder %s32, 0
      %p283 = por %p281, %p282
      %p284 = scmp.ne.s32.totalorder %s270, %s271
      %p285 = scmp.eq.s32.totalorder %s33, 1
      %p286 = por %p284, %p285
      %p288 = scmp.ne.s32.totalorder %s271, %s287
      %p289 = scmp.eq.s32.totalorder %s33, 0
      %p290 = por %p288, %p289
      %p291 = scmp.le.s32.totalorder 1, %s27
      %p292 = scmp.lt.s32.totalorder %s27, 3
      %p293 = pnand %p291, %p292
      %p294 = pneg %p293
      // Predicated region
      $region9: #{tpu_custom_call.1} parent=5 // pred_check
        _
      $region10: #{tpu_custom_call.1} parent=5 // pred_check_branch
        %296 = sbr.rel (%p293) target = $region12
      $region11: #{tpu_custom_call.1} parent=5 // pred_region
        %s297 = ssub.s32 %s27, 1
        // Predicated region
        $region13: #{tpu_custom_call.1} parent=11 // pred_check
          %p298 = pneg %p152
        $region14: #{tpu_custom_call.1} parent=11 // pred_check_branch
          %300 = sbr.rel (%p298) target = $region16
        $region15: #{tpu_custom_call.1} parent=11 // pred_region
          %s302 = ssub.s32 256, 256
          %303 = vsyncadd [#allocation9], %s302
          %s304 = sshll.u32 [#allocation8], 4
          %s305 = int_to_ptr.vmem [resolvable:$true] %s304
          %310 = dma.hbm_to_vmem [thread:$0]  %s4, 256, %s305, [#allocation9], 128, 128, 8
        $region16: #{tpu_custom_call.1} parent=11 // pred_fallthru
          _
        // Predicated region
        $region17: #{tpu_custom_call.1} parent=11 // pred_check
          %p311 = pneg %p173
        $region18: #{tpu_custom_call.1} parent=11 // pred_check_branch
          %313 = sbr.rel (%p311) target = $region20
        $region19: #{tpu_custom_call.1} parent=11 // pred_region
          _
        $region20: #{tpu_custom_call.1} parent=11 // pred_fallthru
          _
        // Predicated region
        $region21: #{tpu_custom_call.1} parent=11 // pred_check
          %p314 = pneg %p194
        $region22: #{tpu_custom_call.1} parent=11 // pred_check_branch
          %316 = sbr.rel (%p314) target = $region24
        $region23: #{tpu_custom_call.1} parent=11 // pred_region
          %s318 = ssub.s32 256, 256
          %319 = vsyncadd [#allocation9], %s318
          %s320 = sshll.u32 [#allocation10], 4
          %s321 = int_to_ptr.vmem [resolvable:$true] %s320
          %326 = dma.hbm_to_vmem [thread:$0]  %s6, 256, %s321, [#allocation9], 128, 128, 8
        $region24: #{tpu_custom_call.1} parent=11 // pred_fallthru
          _
        // Predicated region
        $region25: #{tpu_custom_call.1} parent=11 // pred_check
          %p327 = pneg %p215
        $region26: #{tpu_custom_call.1} parent=11 // pred_check_branch
          %329 = sbr.rel (%p327) target = $region28
        $region27: #{tpu_custom_call.1} parent=11 // pred_region
          _
        $region28: #{tpu_custom_call.1} parent=11 // pred_fallthru
          _
        // Predicated region
        $region29: #{tpu_custom_call.1} parent=11 // pred_check
          %p330 = pneg %p236
        $region30: #{tpu_custom_call.1} parent=11 // pred_check_branch
          %332 = sbr.rel (%p330) target = $region32
        $region31: #{tpu_custom_call.1} parent=11 // pred_region
          %s334 = ssub.s32 256, 256
          %335 = vsyncadd [#allocation12], %s334
          %s336 = sshll.u32 [#allocation11], 4
          %s337 = int_to_ptr.vmem [resolvable:$true] %s336
          %342 = dma.hbm_to_vmem [thread:$0]  %s8, 256, %s337, [#allocation12], 128, 128, 8
        $region32: #{tpu_custom_call.1} parent=11 // pred_fallthru
          _
        // Predicated region
        $region33: #{tpu_custom_call.1} parent=11 // pred_check
          %p343 = pneg %p257
        $region34: #{tpu_custom_call.1} parent=11 // pred_check_branch
          %345 = sbr.rel (%p343) target = $region36
        $region35: #{tpu_custom_call.1} parent=11 // pred_region
          _
        $region36: #{tpu_custom_call.1} parent=11 // pred_fallthru
          _
      $region12: #{tpu_custom_call.1} parent=5 // pred_fallthru
        _
      %p346 = scmp.lt.s32.totalorder %s27, 2
      // Predicated region
      $region37: #{tpu_custom_call.1} parent=5 // pred_check
        %p347 = pneg %p346
      $region38: #{tpu_custom_call.1} parent=5 // pred_check_branch
        %349 = sbr.rel (%p347) target = $region40
      $region39: #{tpu_custom_call.1} parent=5 // pred_region
        // Predicated region
        $region41: #{tpu_custom_call.1} parent=39 // pred_check
          %p350 = pneg %p47
        $region42: #{tpu_custom_call.1} parent=39 // pred_check_branch
          %352 = sbr.rel (%p350) target = $region44
        $region43: #{tpu_custom_call.1} parent=39 // pred_region
          %s353 = sand.u32 %s37, 1
          %s354 = scalar_lea.sflag [#allocation3], %s353
          %s355 = sand.u32 %s37, 1
          %s356 = smul.addr %s355, 8
          %s357 = scalar_lea.vmem [#allocation2], %s356
          %s359 = ssub.s32 128, 128
          %360 = vsyncadd %s354, %s359
          %s361 = smul.addr %s27, 128
          %s362 = scalar_lea.hbm %s0, %s361
          %s364 = sshll.u32 %s357, 4
          %s365 = int_to_ptr.vmem [resolvable:$true] %s364
          %367 = dma.hbm_to_vmem [thread:$0]  %s362, 128, %s365, %s354
        $region44: #{tpu_custom_call.1} parent=39 // pred_fallthru
          _
        // Predicated region
        $region45: #{tpu_custom_call.1} parent=39 // pred_check
          %p368 = pneg %p73
        $region46: #{tpu_custom_call.1} parent=39 // pred_check_branch
          %370 = sbr.rel (%p368) target = $region48
        $region47: #{tpu_custom_call.1} parent=39 // pred_region
          %s371 = sand.u32 %s27, 1
          %s372 = scalar_lea.sflag [#allocation6], %s371
          %s373 = sand.u32 %s63, 1
          %s374 = smul.addr %s373, 8
          %s375 = scalar_lea.vmem [#allocation5], %s374
          %s377 = ssub.s32 128, 128
          %378 = vsyncadd %s372, %s377
          %s379 = smul.addr %s27, 128
          %s380 = scalar_lea.hbm %s1, %s379
          %s382 = sshll.u32 %s375, 4
          %s383 = int_to_ptr.vmem [resolvable:$true] %s382
          %385 = dma.hbm_to_vmem [thread:$0]  %s380, 128, %s383, %s372
        $region48: #{tpu_custom_call.1} parent=39 // pred_fallthru
          _
        // Predicated region
        $region49: #{tpu_custom_call.1} parent=39 // pred_check
          %p386 = pneg %p99
        $region50: #{tpu_custom_call.1} parent=39 // pred_check_branch
          %388 = sbr.rel (%p386) target = $region52
        $region51: #{tpu_custom_call.1} parent=39 // pred_region
          %s389 = sand.u32 %s27, 1
          %s390 = scalar_lea.sflag [#allocation6], %s389
          %s391 = sand.u32 %s89, 1
          %s392 = smul.addr %s391, 8
          %s393 = scalar_lea.vmem [#allocation7], %s392
          %s395 = ssub.s32 128, 128
          %396 = vsyncadd %s390, %s395
          %s397 = smul.addr %s27, 128
          %s398 = scalar_lea.hbm %s2, %s397
          %s400 = sshll.u32 %s393, 4
          %s401 = int_to_ptr.vmem [resolvable:$true] %s400
          %403 = dma.hbm_to_vmem [thread:$0]  %s398, 128, %s401, %s390
        $region52: #{tpu_custom_call.1} parent=39 // pred_fallthru
          _
        // Predicated region
        $region53: #{tpu_custom_call.1} parent=39 // pred_check
          %p404 = pneg %p125
        $region54: #{tpu_custom_call.1} parent=39 // pred_check_branch
          %406 = sbr.rel (%p404) target = $region56
        $region55: #{tpu_custom_call.1} parent=39 // pred_region
          %p407 = scmp.lt.s32.totalorder %s27, 1
          %s408 = scalar_select %p407, %s27, 1
          %s409 = scalar_lea.vmem %s3, %s408
        $region56: #{tpu_custom_call.1} parent=39 // pred_fallthru
          _
      $region40: #{tpu_custom_call.1} parent=5 // pred_fallthru
        _
      %p410 = scmp.le.s32.totalorder 1, %s27
      %p411 = scmp.lt.s32.totalorder %s27, 3
      %p412 = pnand %p410, %p411
      %p413 = pneg %p412
      // Predicated region
      $region57: #{tpu_custom_call.1} parent=5 // pred_check
        _
      $region58: #{tpu_custom_call.1} parent=5 // pred_check_branch
        %415 = sbr.rel (%p412) target = $region60
      $region59: #{tpu_custom_call.1} parent=5 // pred_region
        %s416 = ssub.s32 %s27, 1
        %s417 = sand.u32 %s40, 1
        %s418 = scalar_lea.sflag [#allocation3], %s417
        %s419 = sand.u32 %s40, 1
        %s420 = smul.addr %s419, 8
        %s421 = scalar_lea.vmem [#allocation2], %s420
        // Predicated region
        $region61: #{tpu_custom_call.1} parent=59 // pred_check
          %p422 = pneg %p53
        $region62: #{tpu_custom_call.1} parent=59 // pred_check_branch
          %424 = sbr.rel (%p422) target = $region64
        $region63: #{tpu_custom_call.1} parent=59 // pred_region
          %425 = dma.done %s418, 128
        $region64: #{tpu_custom_call.1} parent=59 // pred_fallthru
          _
        %s426 = sand.u32 %s32, 1
        %s427 = scalar_lea.sflag [#allocation6], %s426
        %s428 = sand.u32 %s66, 1
        %s429 = smul.addr %s428, 8
        %s430 = scalar_lea.vmem [#allocation5], %s429
        // Predicated region
        $region65: #{tpu_custom_call.1} parent=59 // pred_check
          %p431 = pneg %p79
        $region66: #{tpu_custom_call.1} parent=59 // pred_check_branch
          %433 = sbr.rel (%p431) target = $region68
        $region67: #{tpu_custom_call.1} parent=59 // pred_region
          %434 = dma.done %s427, 128
        $region68: #{tpu_custom_call.1} parent=59 // pred_fallthru
          _
        %s435 = sand.u32 %s32, 1
        %s436 = scalar_lea.sflag [#allocation6], %s435
        %s437 = sand.u32 %s92, 1
        %s438 = smul.addr %s437, 8
        %s439 = scalar_lea.vmem [#allocation7], %s438
        // Predicated region
        $region69: #{tpu_custom_call.1} parent=59 // pred_check
          %p440 = pneg %p105
        $region70: #{tpu_custom_call.1} parent=59 // pred_check_branch
          %442 = sbr.rel (%p440) target = $region72
        $region71: #{tpu_custom_call.1} parent=59 // pred_region
          %443 = dma.done %s436, 128
        $region72: #{tpu_custom_call.1} parent=59 // pred_fallthru
          _
        // Predicated region
        $region73: #{tpu_custom_call.1} parent=59 // pred_check
          %p444 = pneg %p152
        $region74: #{tpu_custom_call.1} parent=59 // pred_check_branch
          %446 = sbr.rel (%p444) target = $region76
        $region75: #{tpu_custom_call.1} parent=59 // pred_region
          %447 = dma.done [#allocation9], 256
        $region76: #{tpu_custom_call.1} parent=59 // pred_fallthru
          _
        // Predicated region
        $region77: #{tpu_custom_call.1} parent=59 // pred_check
          %p448 = pneg %p194
        $region78: #{tpu_custom_call.1} parent=59 // pred_check_branch
          %450 = sbr.rel (%p448) target = $region80
        $region79: #{tpu_custom_call.1} parent=59 // pred_region
          %451 = dma.done [#allocation9], 256
        $region80: #{tpu_custom_call.1} parent=59 // pred_fallthru
          _
        // Predicated region
        $region81: #{tpu_custom_call.1} parent=59 // pred_check
          %p452 = pneg %p236
        $region82: #{tpu_custom_call.1} parent=59 // pred_check_branch
          %454 = sbr.rel (%p452) target = $region84
        $region83: #{tpu_custom_call.1} parent=59 // pred_region
          %455 = dma.done [#allocation12], 256
        $region84: #{tpu_custom_call.1} parent=59 // pred_fallthru
          _
        %s456 = sand.u32 %s40, 1
        %s457 = scalar_lea.sflag [#allocation3], %s456
        %s458 = sand.u32 %s40, 1
        %s459 = smul.addr %s458, 8
        %s460 = scalar_lea.vmem [#allocation2], %s459
        %p461 = pneg %p53
        %p462 = pneg %p50
        %s463 = sand.u32 %s32, 1
        %s464 = scalar_lea.sflag [#allocation6], %s463
        %s465 = sand.u32 %s66, 1
        %s466 = smul.addr %s465, 8
        %s467 = scalar_lea.vmem [#allocation5], %s466
        %p468 = pneg %p79
        %p469 = pneg %p76
        %s470 = sand.u32 %s32, 1
        %s471 = scalar_lea.sflag [#allocation6], %s470
        %s472 = sand.u32 %s92, 1
        %s473 = smul.addr %s472, 8
        %s474 = scalar_lea.vmem [#allocation7], %s473
        %p475 = pneg %p105
        %p476 = pneg %p102
        %p477 = scmp.lt.s32.totalorder %s32, 1
        %s478 = scalar_select %p477, %s32, 1
        %s479 = scalar_lea.vmem %s3, %s478
        %p480 = pneg %p131
        %p481 = pneg %p128
        %p482 = pneg %p152
        %p483 = pneg %p149
        %p484 = pneg %p173
        %p485 = pneg %p170
        %p486 = pneg %p194
        %p487 = pneg %p191
        %p488 = pneg %p215
        %p489 = pneg %p212
        %p490 = pneg %p236
        %p491 = pneg %p233
        %p492 = pneg %p257
        %p493 = pneg %p254
        %p494 = pneg %p283
        %p495 = pneg %p280
        %s496 = sand.u32 %s270, 1
        %s497 = scalar_lea.sflag [#allocation4], %s496
        %s498 = sand.u32 %s270, 1
        %s499 = smul.addr %s498, 8
        %s500 = scalar_lea.vmem [#allocation13], %s499
        %p501 = scmp.lt.s32.totalorder %s32, 1
        %s502 = scalar_select %p501, %s32, 1
        %s503 = scalar_lea.vmem %s3, %s502
        %v504 = vld [vmem:[%s421] sm:$0xff]
        %v505 = vld [vmem:[%s430] sm:$0xff]
        %v506 = vld [vmem:[%s439] sm:$0xff]
        %v507 = vld [vmem:[%s503] sm:$0x1]
        %v508 = vld [vmem:[#allocation8] sm:$0xff]
        %v509 = vld [vmem:[#allocation8 + $0x8] sm:$0xff]
        %v510 = vld [vmem:[%s5] sm:$0x1]
        %v512 = vlaneseq
        %v513 = vshrl.u32 %v512, 7
        %v514 = vsub.s32 0, %v513
        %v515 = vrot.slane %v510, %v514
        %vm517 = vcmask 130048
        %v519 = vsel %vm517, %v504, 0
        %521 = vmatprep.subr.mxu0 0.0
        %522 = vmatpush1.msra.mxu0 0.0
        %523 = vmatprep.subr.mxu0 0.0
        %524 = vmatpush1.msra.mxu0 0.0
        %525 = vmatprep.subr.mxu0 0.0
        %526 = vmatpush1.msra.mxu0 0.0
        %527 = vmatprep.subr.mxu0 0.0
        %528 = vmatpush1.msra.mxu0 0.0
        %529 = vmatprep.subr.mxu0 0.0
        %530 = vmatpush1.msra.mxu0 0.0
        %531 = vmatprep.subr.mxu0 0.0
        %532 = vmatpush1.msra.mxu0 0.0
        %533 = vmatprep.subr.mxu0 0.0
        %534 = vmatpush1.msra.mxu0 0.0
        %535 = vmatprep.subr.mxu0 0.0
        %536 = vmatpush1.msra.mxu0 0.0
        %537 = vmatprep.subr.mxu0 0.0
        %538 = vmatpush1.msra.mxu0 0.0
        %539 = vmatprep.subr.mxu0 0.0
        %540 = vmatpush1.msra.mxu0 0.0
        %541 = vmatprep.subr.mxu0 0.0
        %542 = vmatpush1.msra.mxu0 0.0
        %543 = vmatprep.subr.mxu0 0.0
        %544 = vmatpush1.msra.mxu0 0.0
        %545 = vmatprep.subr.mxu0 0.0
        %546 = vmatpush1.msra.mxu0 0.0
        %547 = vmatprep.subr.mxu0 0.0
        %548 = vmatpush1.msra.mxu0 0.0
        %549 = vmatprep.subr.mxu0 0.0
        %550 = vmatpush1.msra.mxu0 %v509
        %551 = vmatprep.subr.mxu0 0.0
        %552 = vmatpush1.msra.mxu0 %v508
        %553 = vmatprep.subr.mxu0 0.0
        %554 = vmatpush2.msra.mxu0 0.0
        %555 = vmatprep.subr.mxu0 0.0
        %556 = vmatpush2.msra.mxu0 0.0
        %557 = vmatprep.subr.mxu0 0.0
        %558 = vmatpush2.msra.mxu0 0.0
        %559 = vmatprep.subr.mxu0 0.0
        %560 = vmatpush2.msra.mxu0 0.0
        %561 = vmatprep.subr.mxu0 0.0
        %562 = vmatpush2.msra.mxu0 0.0
        %563 = vmatprep.subr.mxu0 0.0
        %564 = vmatpush2.msra.mxu0 0.0
        %565 = vmatprep.subr.mxu0 0.0
        %566 = vmatpush2.msra.mxu0 0.0
        %567 = vmatprep.subr.mxu0 0.0
        %568 = vmatpush2.msra.mxu0 0.0
        %569 = vmatprep.subr.mxu0 0.0
        %570 = vmatpush2.msra.mxu0 0.0
        %571 = vmatprep.subr.mxu0 0.0
        %572 = vmatpush2.msra.mxu0 0.0
        %573 = vmatprep.subr.mxu0 0.0
        %574 = vmatpush2.msra.mxu0 0.0
        %575 = vmatprep.subr.mxu0 0.0
        %576 = vmatpush2.msra.mxu0 0.0
        %577 = vmatprep.subr.mxu0 0.0
        %578 = vmatpush2.msra.mxu0 0.0
        %579 = vmatprep.subr.mxu0 0.0
        %580 = vmatpush2.msra.mxu0 0.0
        %581 = vmatprep.subr.mxu0 0.0
        %582 = vmatpush2.msra.mxu0 0.0
        %583 = vmatprep.subr.mxu0 0.0
        %584 = vmatpush2.msra.mxu0 0.0
        %585 = vmatprep.mubr.f32.mxu0 0.0
        %586 = vmatmul.mubr.f32.gmra.mxu0 %v519
        %v587 = vpop.f32.mrf.mxu0
        %v588 = vadd.f32 %v515, %v587
        %v589 = vpop.f32.mrf.mxu0
        %590 = vdwg.mxu0
        %v591 = vld [vmem:[#allocation10] sm:$0xff]
        %v592 = vld [vmem:[#allocation10 + $0x8] sm:$0xff]
        %v593 = vld [vmem:[%s7] sm:$0x1]
        %v595 = vlaneseq
        %v596 = vshrl.u32 %v595, 7
        %v597 = vsub.s32 0, %v596
        %v598 = vrot.slane %v593, %v597
        %v601 = vsel %vm517, %v505, 0
        %603 = vmatprep.subr.mxu0 0.0
        %604 = vmatpush1.msra.mxu0 0.0
        %605 = vmatprep.subr.mxu0 0.0
        %606 = vmatpush1.msra.mxu0 0.0
        %607 = vmatprep.subr.mxu0 0.0
        %608 = vmatpush1.msra.mxu0 0.0
        %609 = vmatprep.subr.mxu0 0.0
        %610 = vmatpush1.msra.mxu0 0.0
        %611 = vmatprep.subr.mxu0 0.0
        %612 = vmatpush1.msra.mxu0 0.0
        %613 = vmatprep.subr.mxu0 0.0
        %614 = vmatpush1.msra.mxu0 0.0
        %615 = vmatprep.subr.mxu0 0.0
        %616 = vmatpush1.msra.mxu0 0.0
        %617 = vmatprep.subr.mxu0 0.0
        %618 = vmatpush1.msra.mxu0 0.0
        %619 = vmatprep.subr.mxu0 0.0
        %620 = vmatpush1.msra.mxu0 0.0
        %621 = vmatprep.subr.mxu0 0.0
        %622 = vmatpush1.msra.mxu0 0.0
        %623 = vmatprep.subr.mxu0 0.0
        %624 = vmatpush1.msra.mxu0 0.0
        %625 = vmatprep.subr.mxu0 0.0
        %626 = vmatpush1.msra.mxu0 0.0
        %627 = vmatprep.subr.mxu0 0.0
        %628 = vmatpush1.msra.mxu0 0.0
        %629 = vmatprep.subr.mxu0 0.0
        %630 = vmatpush1.msra.mxu0 0.0
        %631 = vmatprep.subr.mxu0 0.0
        %632 = vmatpush1.msra.mxu0 %v592
        %633 = vmatprep.subr.mxu0 0.0
        %634 = vmatpush1.msra.mxu0 %v591
        %635 = vmatprep.subr.mxu0 0.0
        %636 = vmatpush2.msra.mxu0 0.0
        %637 = vmatprep.subr.mxu0 0.0
        %638 = vmatpush2.msra.mxu0 0.0
        %639 = vmatprep.subr.mxu0 0.0
        %640 = vmatpush2.msra.mxu0 0.0
        %641 = vmatprep.subr.mxu0 0.0
        %642 = vmatpush2.msra.mxu0 0.0
        %643 = vmatprep.subr.mxu0 0.0
        %644 = vmatpush2.msra.mxu0 0.0
        %645 = vmatprep.subr.mxu0 0.0
        %646 = vmatpush2.msra.mxu0 0.0
        %647 = vmatprep.subr.mxu0 0.0
        %648 = vmatpush2.msra.mxu0 0.0
        %649 = vmatprep.subr.mxu0 0.0
        %650 = vmatpush2.msra.mxu0 0.0
        %651 = vmatprep.subr.mxu0 0.0
        %652 = vmatpush2.msra.mxu0 0.0
        %653 = vmatprep.subr.mxu0 0.0
        %654 = vmatpush2.msra.mxu0 0.0
        %655 = vmatprep.subr.mxu0 0.0
        %656 = vmatpush2.msra.mxu0 0.0
        %657 = vmatprep.subr.mxu0 0.0
        %658 = vmatpush2.msra.mxu0 0.0
        %659 = vmatprep.subr.mxu0 0.0
        %660 = vmatpush2.msra.mxu0 0.0
        %661 = vmatprep.subr.mxu0 0.0
        %662 = vmatpush2.msra.mxu0 0.0
        %663 = vmatprep.subr.mxu0 0.0
        %664 = vmatpush2.msra.mxu0 0.0
        %665 = vmatprep.subr.mxu0 0.0
        %666 = vmatpush2.msra.mxu0 0.0
        %667 = vmatprep.mubr.f32.mxu0 0.0
        %668 = vmatmul.mubr.f32.gmra.mxu0 %v601
        %v669 = vpop.f32.mrf.mxu0
        %v670 = vadd.f32 %v598, %v669
        %v671 = vpop.f32.mrf.mxu0
        %672 = vdwg.mxu0
        %v673 = vld [vmem:[#allocation11] sm:$0xff]
        %v674 = vld [vmem:[#allocation11 + $0x8] sm:$0xff]
        %v675 = vld [vmem:[%s9] sm:$0x1]
        %v677 = vlaneseq
        %v678 = vshrl.u32 %v677, 7
        %v679 = vsub.s32 0, %v678
        %v680 = vrot.slane %v675, %v679
        %v683 = vsel %vm517, %v506, 0
        %685 = vmatprep.subr.mxu0 0.0
        %686 = vmatpush1.msra.mxu0 0.0
        %687 = vmatprep.subr.mxu0 0.0
        %688 = vmatpush1.msra.mxu0 0.0
        %689 = vmatprep.subr.mxu0 0.0
        %690 = vmatpush1.msra.mxu0 0.0
        %691 = vmatprep.subr.mxu0 0.0
        %692 = vmatpush1.msra.mxu0 0.0
        %693 = vmatprep.subr.mxu0 0.0
        %694 = vmatpush1.msra.mxu0 0.0
        %695 = vmatprep.subr.mxu0 0.0
        %696 = vmatpush1.msra.mxu0 0.0
        %697 = vmatprep.subr.mxu0 0.0
        %698 = vmatpush1.msra.mxu0 0.0
        %699 = vmatprep.subr.mxu0 0.0
        %700 = vmatpush1.msra.mxu0 0.0
        %701 = vmatprep.subr.mxu0 0.0
        %702 = vmatpush1.msra.mxu0 0.0
        %703 = vmatprep.subr.mxu0 0.0
        %704 = vmatpush1.msra.mxu0 0.0
        %705 = vmatprep.subr.mxu0 0.0
        %706 = vmatpush1.msra.mxu0 0.0
        %707 = vmatprep.subr.mxu0 0.0
        %708 = vmatpush1.msra.mxu0 0.0
        %709 = vmatprep.subr.mxu0 0.0
        %710 = vmatpush1.msra.mxu0 0.0
        %711 = vmatprep.subr.mxu0 0.0
        %712 = vmatpush1.msra.mxu0 0.0
        %713 = vmatprep.subr.mxu0 0.0
        %714 = vmatpush1.msra.mxu0 %v674
        %715 = vmatprep.subr.mxu0 0.0
        %716 = vmatpush1.msra.mxu0 %v673
        %717 = vmatprep.subr.mxu0 0.0
        %718 = vmatpush2.msra.mxu0 0.0
        %719 = vmatprep.subr.mxu0 0.0
        %720 = vmatpush2.msra.mxu0 0.0
        %721 = vmatprep.subr.mxu0 0.0
        %722 = vmatpush2.msra.mxu0 0.0
        %723 = vmatprep.subr.mxu0 0.0
        %724 = vmatpush2.msra.mxu0 0.0
        %725 = vmatprep.subr.mxu0 0.0
        %726 = vmatpush2.msra.mxu0 0.0
        %727 = vmatprep.subr.mxu0 0.0
        %728 = vmatpush2.msra.mxu0 0.0
        %729 = vmatprep.subr.mxu0 0.0
        %730 = vmatpush2.msra.mxu0 0.0
        %731 = vmatprep.subr.mxu0 0.0
        %732 = vmatpush2.msra.mxu0 0.0
        %733 = vmatprep.subr.mxu0 0.0
        %734 = vmatpush2.msra.mxu0 0.0
        %735 = vmatprep.subr.mxu0 0.0
        %736 = vmatpush2.msra.mxu0 0.0
        %737 = vmatprep.subr.mxu0 0.0
        %738 = vmatpush2.msra.mxu0 0.0
        %739 = vmatprep.subr.mxu0 0.0
        %740 = vmatpush2.msra.mxu0 0.0
        %741 = vmatprep.subr.mxu0 0.0
        %742 = vmatpush2.msra.mxu0 0.0
        %743 = vmatprep.subr.mxu0 0.0
        %744 = vmatpush2.msra.mxu0 0.0
        %745 = vmatprep.subr.mxu0 0.0
        %746 = vmatpush2.msra.mxu0 0.0
        %747 = vmatprep.subr.mxu0 0.0
        %748 = vmatpush2.msra.mxu0 0.0
        %749 = vmatprep.mubr.f32.mxu0 0.0
        %750 = vmatmul.mubr.f32.gmra.mxu0 %v683
        %v751 = vpop.f32.mrf.mxu0
        %v752 = vadd.f32 %v680, %v751
        %v753 = vpop.f32.mrf.mxu0
        %754 = vdwg.mxu0
        %v756 = vlaneseq
        %v757 = vshrl.u32 %v756, 7
        %v758 = vsub.s32 0, %v757
        %v759 = vrot.slane %v507, %v758
        %vm761 = vcmask 64512
        %v763 = vsel %vm761, %v588, 0
        %v766 = vsel %vm761, %v670, 0
        %768 = vmatprep.subr.mxu0 0.0
        %769 = vmatpush1.xpose.msra.mxu0 0.0
        %770 = vmatprep.subr.mxu0 0.0
        %771 = vmatpush1.xpose.msra.mxu0 0.0
        %772 = vmatprep.subr.mxu0 0.0
        %773 = vmatpush1.xpose.msra.mxu0 0.0
        %774 = vmatprep.subr.mxu0 0.0
        %775 = vmatpush1.xpose.msra.mxu0 0.0
        %776 = vmatprep.subr.mxu0 0.0
        %777 = vmatpush1.xpose.msra.mxu0 0.0
        %778 = vmatprep.subr.mxu0 0.0
        %779 = vmatpush1.xpose.msra.mxu0 0.0
        %780 = vmatprep.subr.mxu0 0.0
        %781 = vmatpush1.xpose.msra.mxu0 0.0
        %782 = vmatprep.subr.mxu0 0.0
        %783 = vmatpush1.xpose.msra.mxu0 0.0
        %784 = vmatprep.subr.mxu0 0.0
        %785 = vmatpush1.xpose.msra.mxu0 0.0
        %786 = vmatprep.subr.mxu0 0.0
        %787 = vmatpush1.xpose.msra.mxu0 0.0
        %788 = vmatprep.subr.mxu0 0.0
        %789 = vmatpush1.xpose.msra.mxu0 0.0
        %790 = vmatprep.subr.mxu0 0.0
        %791 = vmatpush1.xpose.msra.mxu0 0.0
        %792 = vmatprep.subr.mxu0 0.0
        %793 = vmatpush1.xpose.msra.mxu0 0.0
        %794 = vmatprep.subr.mxu0 0.0
        %795 = vmatpush1.xpose.msra.mxu0 0.0
        %796 = vmatprep.subr.mxu0 0.0
        %797 = vmatpush1.xpose.msra.mxu0 0.0
        %798 = vmatprep.subr.mxu0 0.0
        %799 = vmatpush1.xpose.msra.mxu0 %v766
        %800 = vmatprep.subr.mxu0 0.0
        %801 = vmatpush2.xpose.msra.mxu0 0.0
        %802 = vmatprep.subr.mxu0 0.0
        %803 = vmatpush2.xpose.msra.mxu0 0.0
        %804 = vmatprep.subr.mxu0 0.0
        %805 = vmatpush2.xpose.msra.mxu0 0.0
        %806 = vmatprep.subr.mxu0 0.0
        %807 = vmatpush2.xpose.msra.mxu0 0.0
        %808 = vmatprep.subr.mxu0 0.0
        %809 = vmatpush2.xpose.msra.mxu0 0.0
        %810 = vmatprep.subr.mxu0 0.0
        %811 = vmatpush2.xpose.msra.mxu0 0.0
        %812 = vmatprep.subr.mxu0 0.0
        %813 = vmatpush2.xpose.msra.mxu0 0.0
        %814 = vmatprep.subr.mxu0 0.0
        %815 = vmatpush2.xpose.msra.mxu0 0.0
        %816 = vmatprep.subr.mxu0 0.0
        %817 = vmatpush2.xpose.msra.mxu0 0.0
        %818 = vmatprep.subr.mxu0 0.0
        %819 = vmatpush2.xpose.msra.mxu0 0.0
        %820 = vmatprep.subr.mxu0 0.0
        %821 = vmatpush2.xpose.msra.mxu0 0.0
        %822 = vmatprep.subr.mxu0 0.0
        %823 = vmatpush2.xpose.msra.mxu0 0.0
        %824 = vmatprep.subr.mxu0 0.0
        %825 = vmatpush2.xpose.msra.mxu0 0.0
        %826 = vmatprep.subr.mxu0 0.0
        %827 = vmatpush2.xpose.msra.mxu0 0.0
        %828 = vmatprep.subr.mxu0 0.0
        %829 = vmatpush2.xpose.msra.mxu0 0.0
        %830 = vmatprep.subr.mxu0 0.0
        %831 = vmatpush2.xpose.msra.mxu0 0.0
        %832 = vmatprep.mubr.f32.mxu0 0.0
        %833 = vmatmul.mubr.f32.gmra.mxu0 %v763
        %v834 = vpop.f32.mrf.mxu0
        %v835 = vadd.f32 %v759, %v834
        %v836 = vpop.f32.mrf.mxu0
        %837 = vdwg.mxu0
        %v838 = vsel %vm761, %v835, -inf
        %839 = vmax.xlane.f32.xlu0 %v838
        %v840 = vpop.xlane.xlu0 %839
        %v841 = vsub.f32 %v835, %v840
        %v842 = vmul.f32 %v841, 1.442695
        %v843 = vpow.pop %v842
        %v844 = vsel %vm761, %v843, 0.0
        %845 = vadd.xlane.f32.xlu0 %v844
        %v846 = vpop.xlane.xlu0 %845
        %v847 = vrcp.pop %v846
        %v848 = vmul.f32 %v843, %v847
        %v850 = vsel %vm761, %v848, 0
        %852 = vmatprep.subr.mxu0 0.0
        %853 = vmatpush1.msra.mxu0 0.0
        %854 = vmatprep.subr.mxu0 0.0
        %855 = vmatpush1.msra.mxu0 0.0
        %856 = vmatprep.subr.mxu0 0.0
        %857 = vmatpush1.msra.mxu0 0.0
        %858 = vmatprep.subr.mxu0 0.0
        %859 = vmatpush1.msra.mxu0 0.0
        %860 = vmatprep.subr.mxu0 0.0
        %861 = vmatpush1.msra.mxu0 0.0
        %862 = vmatprep.subr.mxu0 0.0
        %863 = vmatpush1.msra.mxu0 0.0
        %864 = vmatprep.subr.mxu0 0.0
        %865 = vmatpush1.msra.mxu0 0.0
        %866 = vmatprep.subr.mxu0 0.0
        %867 = vmatpush1.msra.mxu0 0.0
        %868 = vmatprep.subr.mxu0 0.0
        %869 = vmatpush1.msra.mxu0 0.0
        %870 = vmatprep.subr.mxu0 0.0
        %871 = vmatpush1.msra.mxu0 0.0
        %872 = vmatprep.subr.mxu0 0.0
        %873 = vmatpush1.msra.mxu0 0.0
        %874 = vmatprep.subr.mxu0 0.0
        %875 = vmatpush1.msra.mxu0 0.0
        %876 = vmatprep.subr.mxu0 0.0
        %877 = vmatpush1.msra.mxu0 0.0
        %878 = vmatprep.subr.mxu0 0.0
        %879 = vmatpush1.msra.mxu0 0.0
        %880 = vmatprep.subr.mxu0 0.0
        %881 = vmatpush1.msra.mxu0 0.0
        %882 = vmatprep.subr.mxu0 0.0
        %883 = vmatpush1.msra.mxu0 %v752
        %884 = vmatprep.subr.mxu0 0.0
        %885 = vmatpush2.msra.mxu0 0.0
        %886 = vmatprep.subr.mxu0 0.0
        %887 = vmatpush2.msra.mxu0 0.0
        %888 = vmatprep.subr.mxu0 0.0
        %889 = vmatpush2.msra.mxu0 0.0
        %890 = vmatprep.subr.mxu0 0.0
        %891 = vmatpush2.msra.mxu0 0.0
        %892 = vmatprep.subr.mxu0 0.0
        %893 = vmatpush2.msra.mxu0 0.0
        %894 = vmatprep.subr.mxu0 0.0
        %895 = vmatpush2.msra.mxu0 0.0
        %896 = vmatprep.subr.mxu0 0.0
        %897 = vmatpush2.msra.mxu0 0.0
        %898 = vmatprep.subr.mxu0 0.0
        %899 = vmatpush2.msra.mxu0 0.0
        %900 = vmatprep.subr.mxu0 0.0
        %901 = vmatpush2.msra.mxu0 0.0
        %902 = vmatprep.subr.mxu0 0.0
        %903 = vmatpush2.msra.mxu0 0.0
        %904 = vmatprep.subr.mxu0 0.0
        %905 = vmatpush2.msra.mxu0 0.0
        %906 = vmatprep.subr.mxu0 0.0
        %907 = vmatpush2.msra.mxu0 0.0
        %908 = vmatprep.subr.mxu0 0.0
        %909 = vmatpush2.msra.mxu0 0.0
        %910 = vmatprep.subr.mxu0 0.0
        %911 = vmatpush2.msra.mxu0 0.0
        %912 = vmatprep.subr.mxu0 0.0
        %913 = vmatpush2.msra.mxu0 0.0
        %914 = vmatprep.subr.mxu0 0.0
        %915 = vmatpush2.msra.mxu0 0.0
        %916 = vmatprep.mubr.f32.mxu0 0.0
        %917 = vmatmul.mubr.f32.gmra.mxu0 %v850
        %v918 = vpop.f32.mrf.mxu0
        %v919 = vadd.f32 0.0, %v918
        %v920 = vpop.f32.mrf.mxu0
        %921 = vdwg.mxu0
        %922 = vrot.lane.b32.xlu0 %v588, 120
        %v923 = vpop.permute.xlu0 %922
        %924 = vrot.lane.b32.xlu0 %v670, 120
        %v925 = vpop.permute.xlu0 %924
        %v926 = vsel %vm761, %v923, 0
        %v928 = vsel %vm761, %v925, 0
        %930 = vmatprep.subr.mxu0 0.0
        %931 = vmatpush1.xpose.msra.mxu0 0.0
        %932 = vmatprep.subr.mxu0 0.0
        %933 = vmatpush1.xpose.msra.mxu0 0.0
        %934 = vmatprep.subr.mxu0 0.0
        %935 = vmatpush1.xpose.msra.mxu0 0.0
        %936 = vmatprep.subr.mxu0 0.0
        %937 = vmatpush1.xpose.msra.mxu0 0.0
        %938 = vmatprep.subr.mxu0 0.0
        %939 = vmatpush1.xpose.msra.mxu0 0.0
        %940 = vmatprep.subr.mxu0 0.0
        %941 = vmatpush1.xpose.msra.mxu0 0.0
        %942 = vmatprep.subr.mxu0 0.0
        %943 = vmatpush1.xpose.msra.mxu0 0.0
        %944 = vmatprep.subr.mxu0 0.0
        %945 = vmatpush1.xpose.msra.mxu0 0.0
        %946 = vmatprep.subr.mxu0 0.0
        %947 = vmatpush1.xpose.msra.mxu0 0.0
        %948 = vmatprep.subr.mxu0 0.0
        %949 = vmatpush1.xpose.msra.mxu0 0.0
        %950 = vmatprep.subr.mxu0 0.0
        %951 = vmatpush1.xpose.msra.mxu0 0.0
        %952 = vmatprep.subr.mxu0 0.0
        %953 = vmatpush1.xpose.msra.mxu0 0.0
        %954 = vmatprep.subr.mxu0 0.0
        %955 = vmatpush1.xpose.msra.mxu0 0.0
        %956 = vmatprep.subr.mxu0 0.0
        %957 = vmatpush1.xpose.msra.mxu0 0.0
        %958 = vmatprep.subr.mxu0 0.0
        %959 = vmatpush1.xpose.msra.mxu0 0.0
        %960 = vmatprep.subr.mxu0 0.0
        %961 = vmatpush1.xpose.msra.mxu0 %v928
        %962 = vmatprep.subr.mxu0 0.0
        %963 = vmatpush2.xpose.msra.mxu0 0.0
        %964 = vmatprep.subr.mxu0 0.0
        %965 = vmatpush2.xpose.msra.mxu0 0.0
        %966 = vmatprep.subr.mxu0 0.0
        %967 = vmatpush2.xpose.msra.mxu0 0.0
        %968 = vmatprep.subr.mxu0 0.0
        %969 = vmatpush2.xpose.msra.mxu0 0.0
        %970 = vmatprep.subr.mxu0 0.0
        %971 = vmatpush2.xpose.msra.mxu0 0.0
        %972 = vmatprep.subr.mxu0 0.0
        %973 = vmatpush2.xpose.msra.mxu0 0.0
        %974 = vmatprep.subr.mxu0 0.0
        %975 = vmatpush2.xpose.msra.mxu0 0.0
        %976 = vmatprep.subr.mxu0 0.0
        %977 = vmatpush2.xpose.msra.mxu0 0.0
        %978 = vmatprep.subr.mxu0 0.0
        %979 = vmatpush2.xpose.msra.mxu0 0.0
        %980 = vmatprep.subr.mxu0 0.0
        %981 = vmatpush2.xpose.msra.mxu0 0.0
        %982 = vmatprep.subr.mxu0 0.0
        %983 = vmatpush2.xpose.msra.mxu0 0.0
        %984 = vmatprep.subr.mxu0 0.0
        %985 = vmatpush2.xpose.msra.mxu0 0.0
        %986 = vmatprep.subr.mxu0 0.0
        %987 = vmatpush2.xpose.msra.mxu0 0.0
        %988 = vmatprep.subr.mxu0 0.0
        %989 = vmatpush2.xpose.msra.mxu0 0.0
        %990 = vmatprep.subr.mxu0 0.0
        %991 = vmatpush2.xpose.msra.mxu0 0.0
        %992 = vmatprep.subr.mxu0 0.0
        %993 = vmatpush2.xpose.msra.mxu0 0.0
        %994 = vmatprep.mubr.f32.mxu0 0.0
        %995 = vmatmul.mubr.f32.gmra.mxu0 %v926
        %v996 = vpop.f32.mrf.mxu0
        %v997 = vadd.f32 %v759, %v996
        %v998 = vpop.f32.mrf.mxu0
        %999 = vdwg.mxu0
        %v1000 = vsel %vm761, %v997, -inf
        %1001 = vmax.xlane.f32.xlu0 %v1000
        %v1002 = vpop.xlane.xlu0 %1001
        %v1003 = vsub.f32 %v997, %v1002
        %v1004 = vmul.f32 %v1003, 1.442695
        %v1005 = vpow.pop %v1004
        %v1006 = vsel %vm761, %v1005, 0.0
        %1007 = vadd.xlane.f32.xlu0 %v1006
        %v1008 = vpop.xlane.xlu0 %1007
        %v1009 = vrcp.pop %v1008
        %v1010 = vmul.f32 %v1005, %v1009
        %1012 = vrot.lane.b32.xlu0 %v752, 120
        %v1013 = vpop.permute.xlu0 %1012
        %v1016 = vsel %vm761, %v1010, 0
        %1018 = vmatprep.subr.mxu0 0.0
        %1019 = vmatpush1.msra.mxu0 0.0
        %1020 = vmatprep.subr.mxu0 0.0
        %1021 = vmatpush1.msra.mxu0 0.0
        %1022 = vmatprep.subr.mxu0 0.0
        %1023 = vmatpush1.msra.mxu0 0.0
        %1024 = vmatprep.subr.mxu0 0.0
        %1025 = vmatpush1.msra.mxu0 0.0
        %1026 = vmatprep.subr.mxu0 0.0
        %1027 = vmatpush1.msra.mxu0 0.0
        %1028 = vmatprep.subr.mxu0 0.0
        %1029 = vmatpush1.msra.mxu0 0.0
        %1030 = vmatprep.subr.mxu0 0.0
        %1031 = vmatpush1.msra.mxu0 0.0
        %1032 = vmatprep.subr.mxu0 0.0
        %1033 = vmatpush1.msra.mxu0 0.0
        %1034 = vmatprep.subr.mxu0 0.0
        %1035 = vmatpush1.msra.mxu0 0.0
        %1036 = vmatprep.subr.mxu0 0.0
        %1037 = vmatpush1.msra.mxu0 0.0
        %1038 = vmatprep.subr.mxu0 0.0
        %1039 = vmatpush1.msra.mxu0 0.0
        %1040 = vmatprep.subr.mxu0 0.0
        %1041 = vmatpush1.msra.mxu0 0.0
        %1042 = vmatprep.subr.mxu0 0.0
        %1043 = vmatpush1.msra.mxu0 0.0
        %1044 = vmatprep.subr.mxu0 0.0
        %1045 = vmatpush1.msra.mxu0 0.0
        %1046 = vmatprep.subr.mxu0 0.0
        %1047 = vmatpush1.msra.mxu0 0.0
        %1048 = vmatprep.subr.mxu0 0.0
        %1049 = vmatpush1.msra.mxu0 %v1013
        %1050 = vmatprep.subr.mxu0 0.0
        %1051 = vmatpush2.msra.mxu0 0.0
        %1052 = vmatprep.subr.mxu0 0.0
        %1053 = vmatpush2.msra.mxu0 0.0
        %1054 = vmatprep.subr.mxu0 0.0
        %1055 = vmatpush2.msra.mxu0 0.0
        %1056 = vmatprep.subr.mxu0 0.0
        %1057 = vmatpush2.msra.mxu0 0.0
        %1058 = vmatprep.subr.mxu0 0.0
        %1059 = vmatpush2.msra.mxu0 0.0
        %1060 = vmatprep.subr.mxu0 0.0
        %1061 = vmatpush2.msra.mxu0 0.0
        %1062 = vmatprep.subr.mxu0 0.0
        %1063 = vmatpush2.msra.mxu0 0.0
        %1064 = vmatprep.subr.mxu0 0.0
        %1065 = vmatpush2.msra.mxu0 0.0
        %1066 = vmatprep.subr.mxu0 0.0
        %1067 = vmatpush2.msra.mxu0 0.0
        %1068 = vmatprep.subr.mxu0 0.0
        %1069 = vmatpush2.msra.mxu0 0.0
        %1070 = vmatprep.subr.mxu0 0.0
        %1071 = vmatpush2.msra.mxu0 0.0
        %1072 = vmatprep.subr.mxu0 0.0
        %1073 = vmatpush2.msra.mxu0 0.0
        %1074 = vmatprep.subr.mxu0 0.0
        %1075 = vmatpush2.msra.mxu0 0.0
        %1076 = vmatprep.subr.mxu0 0.0
        %1077 = vmatpush2.msra.mxu0 0.0
        %1078 = vmatprep.subr.mxu0 0.0
        %1079 = vmatpush2.msra.mxu0 0.0
        %1080 = vmatprep.subr.mxu0 0.0
        %1081 = vmatpush2.msra.mxu0 0.0
        %1082 = vmatprep.mubr.f32.mxu0 0.0
        %1083 = vmatmul.mubr.f32.gmra.mxu0 %v1016
        %v1084 = vpop.f32.mrf.mxu0
        %v1085 = vadd.f32 0.0, %v1084
        %v1086 = vpop.f32.mrf.mxu0
        %1087 = vdwg.mxu0
        %1088 = vrot.lane.b32.xlu0 %v588, 112
        %v1089 = vpop.permute.xlu0 %1088
        %1090 = vrot.lane.b32.xlu0 %v670, 112
        %v1091 = vpop.permute.xlu0 %1090
        %v1092 = vsel %vm761, %v1089, 0
        %v1094 = vsel %vm761, %v1091, 0
        %1096 = vmatprep.subr.mxu0 0.0
        %1097 = vmatpush1.xpose.msra.mxu0 0.0
        %1098 = vmatprep.subr.mxu0 0.0
        %1099 = vmatpush1.xpose.msra.mxu0 0.0
        %1100 = vmatprep.subr.mxu0 0.0
        %1101 = vmatpush1.xpose.msra.mxu0 0.0
        %1102 = vmatprep.subr.mxu0 0.0
        %1103 = vmatpush1.xpose.msra.mxu0 0.0
        %1104 = vmatprep.subr.mxu0 0.0
        %1105 = vmatpush1.xpose.msra.mxu0 0.0
        %1106 = vmatprep.subr.mxu0 0.0
        %1107 = vmatpush1.xpose.msra.mxu0 0.0
        %1108 = vmatprep.subr.mxu0 0.0
        %1109 = vmatpush1.xpose.msra.mxu0 0.0
        %1110 = vmatprep.subr.mxu0 0.0
        %1111 = vmatpush1.xpose.msra.mxu0 0.0
        %1112 = vmatprep.subr.mxu0 0.0
        %1113 = vmatpush1.xpose.msra.mxu0 0.0
        %1114 = vmatprep.subr.mxu0 0.0
        %1115 = vmatpush1.xpose.msra.mxu0 0.0
        %1116 = vmatprep.subr.mxu0 0.0
        %1117 = vmatpush1.xpose.msra.mxu0 0.0
        %1118 = vmatprep.subr.mxu0 0.0
        %1119 = vmatpush1.xpose.msra.mxu0 0.0
        %1120 = vmatprep.subr.mxu0 0.0
        %1121 = vmatpush1.xpose.msra.mxu0 0.0
        %1122 = vmatprep.subr.mxu0 0.0
        %1123 = vmatpush1.xpose.msra.mxu0 0.0
        %1124 = vmatprep.subr.mxu0 0.0
        %1125 = vmatpush1.xpose.msra.mxu0 0.0
        %1126 = vmatprep.subr.mxu0 0.0
        %1127 = vmatpush1.xpose.msra.mxu0 %v1094
        %1128 = vmatprep.subr.mxu0 0.0
        %1129 = vmatpush2.xpose.msra.mxu0 0.0
        %1130 = vmatprep.subr.mxu0 0.0
        %1131 = vmatpush2.xpose.msra.mxu0 0.0
        %1132 = vmatprep.subr.mxu0 0.0
        %1133 = vmatpush2.xpose.msra.mxu0 0.0
        %1134 = vmatprep.subr.mxu0 0.0
        %1135 = vmatpush2.xpose.msra.mxu0 0.0
        %1136 = vmatprep.subr.mxu0 0.0
        %1137 = vmatpush2.xpose.msra.mxu0 0.0
        %1138 = vmatprep.subr.mxu0 0.0
        %1139 = vmatpush2.xpose.msra.mxu0 0.0
        %1140 = vmatprep.subr.mxu0 0.0
        %1141 = vmatpush2.xpose.msra.mxu0 0.0
        %1142 = vmatprep.subr.mxu0 0.0
        %1143 = vmatpush2.xpose.msra.mxu0 0.0
        %1144 = vmatprep.subr.mxu0 0.0
        %1145 = vmatpush2.xpose.msra.mxu0 0.0
        %1146 = vmatprep.subr.mxu0 0.0
        %1147 = vmatpush2.xpose.msra.mxu0 0.0
        %1148 = vmatprep.subr.mxu0 0.0
        %1149 = vmatpush2.xpose.msra.mxu0 0.0
        %1150 = vmatprep.subr.mxu0 0.0
        %1151 = vmatpush2.xpose.msra.mxu0 0.0
        %1152 = vmatprep.subr.mxu0 0.0
        %1153 = vmatpush2.xpose.msra.mxu0 0.0
        %1154 = vmatprep.subr.mxu0 0.0
        %1155 = vmatpush2.xpose.msra.mxu0 0.0
        %1156 = vmatprep.subr.mxu0 0.0
        %1157 = vmatpush2.xpose.msra.mxu0 0.0
        %1158 = vmatprep.subr.mxu0 0.0
        %1159 = vmatpush2.xpose.msra.mxu0 0.0
        %1160 = vmatprep.mubr.f32.mxu0 0.0
        %1161 = vmatmul.mubr.f32.gmra.mxu0 %v1092
        %v1162 = vpop.f32.mrf.mxu0
        %v1163 = vadd.f32 %v759, %v1162
        %v1164 = vpop.f32.mrf.mxu0
        %1165 = vdwg.mxu0
        %v1166 = vsel %vm761, %v1163, -inf
        %1167 = vmax.xlane.f32.xlu0 %v1166
        %v1168 = vpop.xlane.xlu0 %1167
        %v1169 = vsub.f32 %v1163, %v1168
        %v1170 = vmul.f32 %v1169, 1.442695
        %v1171 = vpow.pop %v1170
        %v1172 = vsel %vm761, %v1171, 0.0
        %1173 = vadd.xlane.f32.xlu0 %v1172
        %v1174 = vpop.xlane.xlu0 %1173
        %v1175 = vrcp.pop %v1174
        %v1176 = vmul.f32 %v1171, %v1175
        %1177 = vrot.lane.b32.xlu0 %v752, 112
        %v1178 = vpop.permute.xlu0 %1177
        %v1181 = vsel %vm761, %v1176, 0
        %1183 = vmatprep.subr.mxu0 0.0
        %1184 = vmatpush1.msra.mxu0 0.0
        %1185 = vmatprep.subr.mxu0 0.0
        %1186 = vmatpush1.msra.mxu0 0.0
        %1187 = vmatprep.subr.mxu0 0.0
        %1188 = vmatpush1.msra.mxu0 0.0
        %1189 = vmatprep.subr.mxu0 0.0
        %1190 = vmatpush1.msra.mxu0 0.0
        %1191 = vmatprep.subr.mxu0 0.0
        %1192 = vmatpush1.msra.mxu0 0.0
        %1193 = vmatprep.subr.mxu0 0.0
        %1194 = vmatpush1.msra.mxu0 0.0
        %1195 = vmatprep.subr.mxu0 0.0
        %1196 = vmatpush1.msra.mxu0 0.0
        %1197 = vmatprep.subr.mxu0 0.0
        %1198 = vmatpush1.msra.mxu0 0.0
        %1199 = vmatprep.subr.mxu0 0.0
        %1200 = vmatpush1.msra.mxu0 0.0
        %1201 = vmatprep.subr.mxu0 0.0
        %1202 = vmatpush1.msra.mxu0 0.0
        %1203 = vmatprep.subr.mxu0 0.0
        %1204 = vmatpush1.msra.mxu0 0.0
        %1205 = vmatprep.subr.mxu0 0.0
        %1206 = vmatpush1.msra.mxu0 0.0
        %1207 = vmatprep.subr.mxu0 0.0
        %1208 = vmatpush1.msra.mxu0 0.0
        %1209 = vmatprep.subr.mxu0 0.0
        %1210 = vmatpush1.msra.mxu0 0.0
        %1211 = vmatprep.subr.mxu0 0.0
        %1212 = vmatpush1.msra.mxu0 0.0
        %1213 = vmatprep.subr.mxu0 0.0
        %1214 = vmatpush1.msra.mxu0 %v1178
        %1215 = vmatprep.subr.mxu0 0.0
        %1216 = vmatpush2.msra.mxu0 0.0
        %1217 = vmatprep.subr.mxu0 0.0
        %1218 = vmatpush2.msra.mxu0 0.0
        %1219 = vmatprep.subr.mxu0 0.0
        %1220 = vmatpush2.msra.mxu0 0.0
        %1221 = vmatprep.subr.mxu0 0.0
        %1222 = vmatpush2.msra.mxu0 0.0
        %1223 = vmatprep.subr.mxu0 0.0
        %1224 = vmatpush2.msra.mxu0 0.0
        %1225 = vmatprep.subr.mxu0 0.0
        %1226 = vmatpush2.msra.mxu0 0.0
        %1227 = vmatprep.subr.mxu0 0.0
        %1228 = vmatpush2.msra.mxu0 0.0
        %1229 = vmatprep.subr.mxu0 0.0
        %1230 = vmatpush2.msra.mxu0 0.0
        %1231 = vmatprep.subr.mxu0 0.0
        %1232 = vmatpush2.msra.mxu0 0.0
        %1233 = vmatprep.subr.mxu0 0.0
        %1234 = vmatpush2.msra.mxu0 0.0
        %1235 = vmatprep.subr.mxu0 0.0
        %1236 = vmatpush2.msra.mxu0 0.0
        %1237 = vmatprep.subr.mxu0 0.0
        %1238 = vmatpush2.msra.mxu0 0.0
        %1239 = vmatprep.subr.mxu0 0.0
        %1240 = vmatpush2.msra.mxu0 0.0
        %1241 = vmatprep.subr.mxu0 0.0
        %1242 = vmatpush2.msra.mxu0 0.0
        %1243 = vmatprep.subr.mxu0 0.0
        %1244 = vmatpush2.msra.mxu0 0.0
        %1245 = vmatprep.subr.mxu0 0.0
        %1246 = vmatpush2.msra.mxu0 0.0
        %1247 = vmatprep.mubr.f32.mxu0 0.0
        %1248 = vmatmul.mubr.f32.gmra.mxu0 %v1181
        %v1249 = vpop.f32.mrf.mxu0
        %v1250 = vadd.f32 0.0, %v1249
        %v1251 = vpop.f32.mrf.mxu0
        %1252 = vdwg.mxu0
        %1253 = vrot.lane.b32.xlu0 %v588, 104
        %v1254 = vpop.permute.xlu0 %1253
        %1255 = vrot.lane.b32.xlu0 %v670, 104
        %v1256 = vpop.permute.xlu0 %1255
        %v1257 = vsel %vm761, %v1254, 0
        %v1259 = vsel %vm761, %v1256, 0
        %1261 = vmatprep.subr.mxu0 0.0
        %1262 = vmatpush1.xpose.msra.mxu0 0.0
        %1263 = vmatprep.subr.mxu0 0.0
        %1264 = vmatpush1.xpose.msra.mxu0 0.0
        %1265 = vmatprep.subr.mxu0 0.0
        %1266 = vmatpush1.xpose.msra.mxu0 0.0
        %1267 = vmatprep.subr.mxu0 0.0
        %1268 = vmatpush1.xpose.msra.mxu0 0.0
        %1269 = vmatprep.subr.mxu0 0.0
        %1270 = vmatpush1.xpose.msra.mxu0 0.0
        %1271 = vmatprep.subr.mxu0 0.0
        %1272 = vmatpush1.xpose.msra.mxu0 0.0
        %1273 = vmatprep.subr.mxu0 0.0
        %1274 = vmatpush1.xpose.msra.mxu0 0.0
        %1275 = vmatprep.subr.mxu0 0.0
        %1276 = vmatpush1.xpose.msra.mxu0 0.0
        %1277 = vmatprep.subr.mxu0 0.0
        %1278 = vmatpush1.xpose.msra.mxu0 0.0
        %1279 = vmatprep.subr.mxu0 0.0
        %1280 = vmatpush1.xpose.msra.mxu0 0.0
        %1281 = vmatprep.subr.mxu0 0.0
        %1282 = vmatpush1.xpose.msra.mxu0 0.0
        %1283 = vmatprep.subr.mxu0 0.0
        %1284 = vmatpush1.xpose.msra.mxu0 0.0
        %1285 = vmatprep.subr.mxu0 0.0
        %1286 = vmatpush1.xpose.msra.mxu0 0.0
        %1287 = vmatprep.subr.mxu0 0.0
        %1288 = vmatpush1.xpose.msra.mxu0 0.0
        %1289 = vmatprep.subr.mxu0 0.0
        %1290 = vmatpush1.xpose.msra.mxu0 0.0
        %1291 = vmatprep.subr.mxu0 0.0
        %1292 = vmatpush1.xpose.msra.mxu0 %v1259
        %1293 = vmatprep.subr.mxu0 0.0
        %1294 = vmatpush2.xpose.msra.mxu0 0.0
        %1295 = vmatprep.subr.mxu0 0.0
        %1296 = vmatpush2.xpose.msra.mxu0 0.0
        %1297 = vmatprep.subr.mxu0 0.0
        %1298 = vmatpush2.xpose.msra.mxu0 0.0
        %1299 = vmatprep.subr.mxu0 0.0
        %1300 = vmatpush2.xpose.msra.mxu0 0.0
        %1301 = vmatprep.subr.mxu0 0.0
        %1302 = vmatpush2.xpose.msra.mxu0 0.0
        %1303 = vmatprep.subr.mxu0 0.0
        %1304 = vmatpush2.xpose.msra.mxu0 0.0
        %1305 = vmatprep.subr.mxu0 0.0
        %1306 = vmatpush2.xpose.msra.mxu0 0.0
        %1307 = vmatprep.subr.mxu0 0.0
        %1308 = vmatpush2.xpose.msra.mxu0 0.0
        %1309 = vmatprep.subr.mxu0 0.0
        %1310 = vmatpush2.xpose.msra.mxu0 0.0
        %1311 = vmatprep.subr.mxu0 0.0
        %1312 = vmatpush2.xpose.msra.mxu0 0.0
        %1313 = vmatprep.subr.mxu0 0.0
        %1314 = vmatpush2.xpose.msra.mxu0 0.0
        %1315 = vmatprep.subr.mxu0 0.0
        %1316 = vmatpush2.xpose.msra.mxu0 0.0
        %1317 = vmatprep.subr.mxu0 0.0
        %1318 = vmatpush2.xpose.msra.mxu0 0.0
        %1319 = vmatprep.subr.mxu0 0.0
        %1320 = vmatpush2.xpose.msra.mxu0 0.0
        %1321 = vmatprep.subr.mxu0 0.0
        %1322 = vmatpush2.xpose.msra.mxu0 0.0
        %1323 = vmatprep.subr.mxu0 0.0
        %1324 = vmatpush2.xpose.msra.mxu0 0.0
        %1325 = vmatprep.mubr.f32.mxu0 0.0
        %1326 = vmatmul.mubr.f32.gmra.mxu0 %v1257
        %v1327 = vpop.f32.mrf.mxu0
        %v1328 = vadd.f32 %v759, %v1327
        %v1329 = vpop.f32.mrf.mxu0
        %1330 = vdwg.mxu0
        %v1331 = vsel %vm761, %v1328, -inf
        %1332 = vmax.xlane.f32.xlu0 %v1331
        %v1333 = vpop.xlane.xlu0 %1332
        %v1334 = vsub.f32 %v1328, %v1333
        %v1335 = vmul.f32 %v1334, 1.442695
        %v1336 = vpow.pop %v1335
        %v1337 = vsel %vm761, %v1336, 0.0
        %1338 = vadd.xlane.f32.xlu0 %v1337
        %v1339 = vpop.xlane.xlu0 %1338
        %v1340 = vrcp.pop %v1339
        %v1341 = vmul.f32 %v1336, %v1340
        %1342 = vrot.lane.b32.xlu0 %v752, 104
        %v1343 = vpop.permute.xlu0 %1342
        %v1346 = vsel %vm761, %v1341, 0
        %1348 = vmatprep.subr.mxu0 0.0
        %1349 = vmatpush1.msra.mxu0 0.0
        %1350 = vmatprep.subr.mxu0 0.0
        %1351 = vmatpush1.msra.mxu0 0.0
        %1352 = vmatprep.subr.mxu0 0.0
        %1353 = vmatpush1.msra.mxu0 0.0
        %1354 = vmatprep.subr.mxu0 0.0
        %1355 = vmatpush1.msra.mxu0 0.0
        %1356 = vmatprep.subr.mxu0 0.0
        %1357 = vmatpush1.msra.mxu0 0.0
        %1358 = vmatprep.subr.mxu0 0.0
        %1359 = vmatpush1.msra.mxu0 0.0
        %1360 = vmatprep.subr.mxu0 0.0
        %1361 = vmatpush1.msra.mxu0 0.0
        %1362 = vmatprep.subr.mxu0 0.0
        %1363 = vmatpush1.msra.mxu0 0.0
        %1364 = vmatprep.subr.mxu0 0.0
        %1365 = vmatpush1.msra.mxu0 0.0
        %1366 = vmatprep.subr.mxu0 0.0
        %1367 = vmatpush1.msra.mxu0 0.0
        %1368 = vmatprep.subr.mxu0 0.0
        %1369 = vmatpush1.msra.mxu0 0.0
        %1370 = vmatprep.subr.mxu0 0.0
        %1371 = vmatpush1.msra.mxu0 0.0
        %1372 = vmatprep.subr.mxu0 0.0
        %1373 = vmatpush1.msra.mxu0 0.0
        %1374 = vmatprep.subr.mxu0 0.0
        %1375 = vmatpush1.msra.mxu0 0.0
        %1376 = vmatprep.subr.mxu0 0.0
        %1377 = vmatpush1.msra.mxu0 0.0
        %1378 = vmatprep.subr.mxu0 0.0
        %1379 = vmatpush1.msra.mxu0 %v1343
        %1380 = vmatprep.subr.mxu0 0.0
        %1381 = vmatpush2.msra.mxu0 0.0
        %1382 = vmatprep.subr.mxu0 0.0
        %1383 = vmatpush2.msra.mxu0 0.0
        %1384 = vmatprep.subr.mxu0 0.0
        %1385 = vmatpush2.msra.mxu0 0.0
        %1386 = vmatprep.subr.mxu0 0.0
        %1387 = vmatpush2.msra.mxu0 0.0
        %1388 = vmatprep.subr.mxu0 0.0
        %1389 = vmatpush2.msra.mxu0 0.0
        %1390 = vmatprep.subr.mxu0 0.0
        %1391 = vmatpush2.msra.mxu0 0.0
        %1392 = vmatprep.subr.mxu0 0.0
        %1393 = vmatpush2.msra.mxu0 0.0
        %1394 = vmatprep.subr.mxu0 0.0
        %1395 = vmatpush2.msra.mxu0 0.0
        %1396 = vmatprep.subr.mxu0 0.0
        %1397 = vmatpush2.msra.mxu0 0.0
        %1398 = vmatprep.subr.mxu0 0.0
        %1399 = vmatpush2.msra.mxu0 0.0
        %1400 = vmatprep.subr.mxu0 0.0
        %1401 = vmatpush2.msra.mxu0 0.0
        %1402 = vmatprep.subr.mxu0 0.0
        %1403 = vmatpush2.msra.mxu0 0.0
        %1404 = vmatprep.subr.mxu0 0.0
        %1405 = vmatpush2.msra.mxu0 0.0
        %1406 = vmatprep.subr.mxu0 0.0
        %1407 = vmatpush2.msra.mxu0 0.0
        %1408 = vmatprep.subr.mxu0 0.0
        %1409 = vmatpush2.msra.mxu0 0.0
        %1410 = vmatprep.subr.mxu0 0.0
        %1411 = vmatpush2.msra.mxu0 0.0
        %1412 = vmatprep.mubr.f32.mxu0 0.0
        %1413 = vmatmul.mubr.f32.gmra.mxu0 %v1346
        %v1414 = vpop.f32.mrf.mxu0
        %v1415 = vadd.f32 0.0, %v1414
        %v1416 = vpop.f32.mrf.mxu0
        %1417 = vdwg.mxu0
        %1419 = vrot.lane.b32.xlu0 %v1085, 8
        %v1420 = vpop.permute.xlu0 %1419
        %1423 = vrot.lane.b32.xlu0 %v1250, 16
        %v1424 = vpop.permute.xlu0 %1423
        %1427 = vrot.lane.b32.xlu0 %v1415, 24
        %v1428 = vpop.permute.xlu0 %1427
        %v1430 = vsel %vm761, %v919, %v1420
        %v1431 = vsel %vm517, %v1430, %v1424
        %vm1432 = vcmask 195584
        %v1433 = vsel %vm1432, %v1431, %v1428
        %vm1434 = vcmask 261120
        %1435 = vst.msk [vmem:[%s500] sm:$0xff] %vm1434, %v1433
        %s1436 = sand.u32 %s270, 1
        %s1437 = scalar_lea.sflag [#allocation4], %s1436
        %s1438 = sand.u32 %s270, 1
        %s1439 = smul.addr %s1438, 8
        %s1440 = scalar_lea.vmem [#allocation13], %s1439
        // Predicated region
        $region85: #{tpu_custom_call.1} parent=59 // pred_check
          %p1441 = pneg %p280
        $region86: #{tpu_custom_call.1} parent=59 // pred_check_branch
          %1443 = sbr.rel (%p1441) target = $region88
        $region87: #{tpu_custom_call.1} parent=59 // pred_region
          %s1445 = ssub.s32 128, 128
          %1446 = vsyncadd %s1437, %s1445
          %s1447 = smul.addr %s32, 128
          %s1448 = scalar_lea.hbm %s10, %s1447
          %s1450 = sshll.u32 %s1440, 4
          %s1451 = int_to_ptr.vmem [resolvable:$true] %s1450
          %1453 = dma.vmem_to_hbm [thread:$0]  %s1451, 128, %s1448, %s1437
        $region88: #{tpu_custom_call.1} parent=59 // pred_fallthru
          _
      $region60: #{tpu_custom_call.1} parent=5 // pred_fallthru
        _
      %p1454 = scmp.le.s32.totalorder 2, %s27
      // Predicated region
      $region89: #{tpu_custom_call.1} parent=5 // pred_check
        %p1455 = pneg %p1454
      $region90: #{tpu_custom_call.1} parent=5 // pred_check_branch
        %1457 = sbr.rel (%p1455) target = $region92
      $region91: #{tpu_custom_call.1} parent=5 // pred_region
        %s1458 = ssub.s32 %s27, 2
        // Predicated region
        $region93: #{tpu_custom_call.1} parent=91 // pred_check
          %p1459 = pneg %p286
        $region94: #{tpu_custom_call.1} parent=91 // pred_check_branch
          %1461 = sbr.rel (%p1459) target = $region96
        $region95: #{tpu_custom_call.1} parent=91 // pred_region
          %s1462 = sand.u32 %s271, 1
          %s1463 = scalar_lea.sflag [#allocation4], %s1462
          %s1464 = sand.u32 %s271, 1
          %s1465 = smul.addr %s1464, 8
          %s1466 = scalar_lea.vmem [#allocation13], %s1465
          %1467 = dma.done %s1463, 128
        $region96: #{tpu_custom_call.1} parent=91 // pred_fallthru
          _
      $region92: #{tpu_custom_call.1} parent=5 // pred_fallthru
        _
    $region6: #{tpu_custom_call.1} parent=1 // loop_footer
      %s31 = sadd.s32 1, %s27
    $region7: #{tpu_custom_call.1} parent=1 // loop_footer_branch
      %26 = sbr.rel target = $region3
    $region8: #{tpu_custom_call.1} parent=1 // loop_exit
      _
    %1468 = vsyncpa [#allocation3], 1
    %s1469 = scalar_lea.sflag [#allocation3], 1
    %1470 = vsyncpa %s1469, 1
    %1471 = vsyncpa [#allocation6], 1
    %s1472 = scalar_lea.sflag [#allocation6], 1
    %1473 = vsyncpa %s1472, 1
    %1474 = vsyncpa [#allocation9], 1
    %1475 = vsyncpa [#allocation12], 1
    %1476 = vsyncpa [#allocation4], 1
    %s1477 = scalar_lea.sflag [#allocation4], 1
    %1478 = vsyncpa %s1477, 1

</llo_original>
